<compile_context>
chip_gen: v7x
topology: tpu7x:2x2x1
jax: 0.10.0
libtpu: 0.0.40
codegen_flags: <defaults>
</compile_context>

<pallas_src>
import functools

import jax
import jax.numpy as jnp
from jax.experimental import pallas as pl
from jax.experimental.pallas import tpu as pltpu

# ------------------------------ configuration ------------------------------
INPUT_SIZE = 8      # RNN input_size
NUM_CELLS = 16      # RNN hidden size (== cond length fed to the UNet)
TARGET_DIM = 16     # spatial length of the 1-D UNet (== NUM_CELLS so cond matches)
PRED_LEN = 8        # prediction_length == UNet in_channels
SCALE_C = 0.5
BETA_MIN = 0.1
BETA_MAX = 20.0
BASE_CH = 16        # UNet base_channels (>= PRED_LEN + 2)
DEPTH = 3           # UNet depth (3 SiLU convs + 1 linear output conv)
LOSS_EPS = 1e-5     # continuous-time lower cutoff in the DSM loss


def _mod_const(x, k):
    """x % k for a static python int k (power-of-two fast path, VPU-only ops)."""
    if k & (k - 1) == 0:
        return jnp.bitwise_and(x, k - 1)
    return x % k


# --------------------------- fused forward kernel ---------------------------
def _fused_kernel(data_tm_ref, x0_ref, z_ref, t_ref,
                  gru_w_ref, gru_b_ref, conv_w_ref, conv_b_ref,
                  lik_ref, mean_ref,
                  h0_scr,
                  *, B, T, F, K, P, H, cu, scale_c, beta_min, beta_max):
    f32 = jnp.float32
    N = B * T
    NK = N * K

    # ---------------- lane bookkeeping (iota constants) ---------------------
    lane1 = jax.lax.broadcasted_iota(jnp.int32, (1, NK), 1)
    kpos = _mod_const(lane1, K)
    is_first = kpos == 0                    # spatial position k == 0
    is_last = kpos == (K - 1)               # spatial position k == K-1

    lane_n = jax.lax.broadcasted_iota(jnp.int32, (N, NK), 1)
    row_n = jax.lax.broadcasted_iota(jnp.int32, (N, NK), 0)
    # expand[n, n*K + k] = 1 : sample-id -> lane-window membership matrix,
    # used both for broadcasting t per sample and for the per-sample reduction.
    expand = jnp.logical_and(lane_n >= row_n * K,
                             lane_n < (row_n + 1) * K).astype(f32)      # (N, NK)

    # ---------------- GRU: batched over B, serial only in T -----------------
    w_i = gru_w_ref[0:F, :]                                              # (F, 3H)
    w_h = gru_w_ref[F:F + H, :]                                          # (H, 3H)
    b_i = gru_b_ref[0:1, :]
    b_h = gru_b_ref[1:2, :]
    # hoisted input projection on time-major data: rows [t*B:(t+1)*B] = step t
    gi_all = jnp.dot(data_tm_ref[...], w_i,
                     preferred_element_type=f32) + b_i                   # (T*B, 3H)

    h = jnp.zeros((B, H), f32)
    for t_step in range(T):
        gi = gi_all[t_step * B:(t_step + 1) * B, :]                      # (B, 3H)
        gh = jnp.dot(h, w_h, preferred_element_type=f32) + b_h           # (B, 3H)
        r = jax.nn.sigmoid(gi[:, 0:H] + gh[:, 0:H])
        zg = jax.nn.sigmoid(gi[:, H:2 * H] + gh[:, H:2 * H])
        ng = jnp.tanh(gi[:, 2 * H:3 * H] + r * gh[:, 2 * H:3 * H])
        h = (1.0 - zg) * ng + zg * h
        hs = h * scale_c
        # scatter rnn_outputs*scale_c into the UNet cond channel (row P),
        # batch-major sample order n = b*T + t (matches x0 / z / outputs).
        for b in range(B):
            n_idx = b * T + t_step
            h0_scr[P:P + 1, n_idx * K:(n_idx + 1) * K] = hs[b:b + 1, :]

    # ---------------- VPSDE perturbation (one EUP exp) ----------------------
    t_row = jnp.dot(t_ref[...], expand, preferred_element_type=f32)      # (1, NK)
    log_mc = -0.25 * t_row * t_row * (beta_max - beta_min) - 0.5 * t_row * beta_min
    mean_row = jnp.exp(log_mc)
    # var = 1 - exp(2*log_mc), computed stably: series for tiny |2*log_mc|,
    # 1 - mean^2 otherwise (single exp; avoids catastrophic cancellation).
    x2 = 2.0 * log_mc
    var = jnp.where(x2 > -1e-3, -x2 * (1.0 + 0.5 * x2),
                    1.0 - mean_row * mean_row)
    std_row = jnp.sqrt(jnp.maximum(var, 0.0))
    z_cf = z_ref[...]                                                    # (P, NK)
    perturbed = mean_row * x0_ref[...] + std_row * z_cf                  # (P, NK)

    # assemble the first UNet input (channels-first): [x | cond | t | zero pad]
    h0_scr[0:P, :] = perturbed
    h0_scr[P + 1:P + 2, :] = t_row
    if cu > P + 2:
        # load-bearing: padded weight columns are zero, but 0 * stale-NaN = NaN
        h0_scr[P + 2:cu, :] = jnp.zeros((cu - (P + 2), NK), f32)

    # ---------------- UNet1DSameRes: conv(k=3,pad=1) = 3 accumulated dots ---
    def conv3(hcf, layer, silu):
        # hcf: (cu, NK) channels-first activation, entirely in vregs
        prev = jnp.where(is_first, 0.0, pltpu.roll(hcf, 1, axis=1))       # x[l-1]
        nxt = jnp.where(is_last, 0.0, pltpu.roll(hcf, NK - 1, axis=1))    # x[l+1]
        out = (jnp.dot(conv_w_ref[layer, 0, :, :], prev,
                       preferred_element_type=f32)
               + jnp.dot(conv_w_ref[layer, 1, :, :], hcf,
                         preferred_element_type=f32)
               + jnp.dot(conv_w_ref[layer, 2, :, :], nxt,
                         preferred_element_type=f32)
               + conv_b_ref[layer, :, :])                                 # (Cout, NK)
        if silu:
            out = out * jax.nn.sigmoid(out)
        return out

    hcur = conv3(h0_scr[...], 0, True)
    hcur = conv3(hcur, 1, True)
    hcur = conv3(hcur, 2, True)
    model_out = conv3(hcur, 3, False)[0:P, :]       # drop zero-padded output rows

    # ---------------- DSM loss: per-sample mean of (z - eps_hat)^2 ----------
    d = z_cf - model_out
    colsum = jnp.sum(d * d, axis=0, keepdims=True)                        # (1, NK)
    # reuse `expand` with a transposed-RHS contraction: (1,NK)·(N,NK)^T -> (1,N)
    lik_row = jax.lax.dot_general(
        colsum, expand, dimension_numbers=(((1,), (1,)), ((), ())),
        preferred_element_type=f32) * (1.0 / (P * K))
    lik_ref[...] = lik_row                                                # (1, N)
    mean_ref[...] = jnp.sum(lik_row, axis=1, keepdims=True) * (1.0 / N)   # (1, 1)


# --------------------------- TrainingNetwork.forward ------------------------
def training_network_forward(params, data, target, key):
    """Mirrors TrainingNetwork.forward: returns (mean loss scalar, likelihoods (B*T,1))."""
    B, T, F = data.shape
    _, _, P, K = target.shape
    H = NUM_CELLS
    assert H == K, "cond length (num_cells) must equal target_dim for this UNet"
    assert BASE_CH >= P + 2, "UNet base_channels must cover x + cond + time channels"
    N = B * T
    NK = N * K

    # diffusion time + noise (layouts chosen to match the kernel's channels-first slabs)
    k_t, k_z = jax.random.split(key)
    t = jax.random.uniform(k_t, (1, N), jnp.float32) * (1.0 - LOSS_EPS) + LOSS_EPS
    z_cf = jax.random.normal(k_z, (P, NK), jnp.float32)

    # x0 channels-first: x0_cf[p, n*K + k] = target[b, t, p, k]  (n = b*T + t)
    x0_cf = jnp.transpose(target.reshape(N, P, K), (1, 0, 2)).reshape(P, NK)
    # GRU input time-major: row t*B + b = data[b, t, :] (contiguous (B,3H) per step)
    data_tm = jnp.transpose(data, (1, 0, 2)).reshape(T * B, F)

    kern = functools.partial(_fused_kernel, B=B, T=T, F=F, K=K, P=P, H=H,
                             cu=BASE_CH, scale_c=SCALE_C,
                             beta_min=BETA_MIN, beta_max=BETA_MAX)
    lik_row, loss = pl.pallas_call(
        kern,
        out_shape=(jax.ShapeDtypeStruct((1, N), jnp.float32),
                   jax.ShapeDtypeStruct((1, 1), jnp.float32)),
        scratch_shapes=[pltpu.VMEM((BASE_CH, NK), jnp.float32)],   # UNet input assembly
    )(data_tm, x0_cf, z_cf, t,
      params['gru_w'], params['gru_b'], params['conv_w'], params['conv_b'])

    likelihoods = lik_row.reshape(N, 1)   # (1,N)->(N,1) is layout-preserving (free)
    return loss[0, 0], likelihoods


# ------------------------------- init params --------------------------------
def init_params(key):
    keys = jax.random.split(key, 12)
    ki = iter(keys)

    def u(k, shape, fan):
        bound = 1.0 / float(fan) ** 0.5
        return jax.random.uniform(k, shape, jnp.float32, -bound, bound)

    H, F = NUM_CELLS, INPUT_SIZE
    # GRU (packed gate order [r | z | n], stored (in_dim, 3H) so the kernel does x @ W)
    w_i = u(next(ki), (F, 3 * H), H)
    w_h = u(next(ki), (H, 3 * H), H)
    b_i = u(next(ki), (1, 3 * H), H)
    b_h = u(next(ki), (1, 3 * H), H)
    gru_w = jnp.concatenate([w_i, w_h], axis=0)          # (F+H, 3H) one DMA
    gru_b = jnp.concatenate([b_i, b_h], axis=0)          # (2, 3H)   one DMA

    # Conv weights split by tap (prev/mid/next) and stacked over layers:
    # conv_w[layer, tap, o, c] ; padded to (BASE_CH, BASE_CH) so one slab covers all layers.
    def conv_taps(kw, kb, cin, cout, cpad):
        fan = cin * 3
        w = u(kw, (cout, cin, 3), fan)                   # torch Conv1d layout (Cout, Cin, k)
        b = u(kb, (cout,), fan)
        w = jnp.pad(w, ((0, cpad - cout), (0, cpad - cin), (0, 0)))   # zero-pad unused ch
        b = jnp.pad(b, (0, cpad - cout))
        w_taps = jnp.transpose(w, (2, 0, 1))             # (3, cpad, cpad): tap-major
        return w_taps, b.reshape(cpad, 1)

    w_list, b_list = [], []
    cin = PRED_LEN + 2                                   # x channels + cond + time
    for _ in range(DEPTH):
        wt, bt = conv_taps(next(ki), next(ki), cin, BASE_CH, BASE_CH)
        w_list.append(wt)
        b_list.append(bt)
        cin = BASE_CH
    wt, bt = conv_taps(next(ki), next(ki), cin, PRED_LEN, BASE_CH)   # output conv (rows padded)
    w_list.append(wt)
    b_list.append(bt)

    conv_w = jnp.stack(w_list, axis=0)                   # (DEPTH+1, 3, BASE_CH, BASE_CH)
    conv_b = jnp.stack(b_list, axis=0)                   # (DEPTH+1, BASE_CH, 1)
    return {'gru_w': gru_w, 'gru_b': gru_b, 'conv_w': conv_w, 'conv_b': conv_b}


# ----------------------------------- main ------------------------------------
if __name__ == "__main__":
    key = jax.random.PRNGKey(0)
    k_params, k_data, k_target, k_noise = jax.random.split(key, 4)

    params = init_params(k_params)
    B, T = 2, 4
    data = jax.random.normal(k_data, (B, T, INPUT_SIZE), jnp.float32)
    target = jax.random.normal(k_target, (B, T, PRED_LEN, TARGET_DIM), jnp.float32)

    fwd = jax.jit(training_network_forward)
    loss, likelihoods = fwd(params, data, target, k_noise)
    jax.block_until_ready((loss, likelihoods))
    assert likelihoods.shape == (B * T, 1)
    assert loss.shape == ()
    print("KERNEL_OK")
</pallas_src>

<mosaic_0001>
module attributes {stable_mosaic.version = 11 : i64} {
  func.func @_fused_kernel(%arg0: memref<8x8xf32, #tpu.memory_space<vmem>>, %arg1: memref<8x128xf32, #tpu.memory_space<vmem>>, %arg2: memref<8x128xf32, #tpu.memory_space<vmem>>, %arg3: memref<1x8xf32, #tpu.memory_space<vmem>>, %arg4: memref<24x48xf32, #tpu.memory_space<vmem>>, %arg5: memref<2x48xf32, #tpu.memory_space<vmem>>, %arg6: memref<4x3x16x16xf32, #tpu.memory_space<vmem>>, %arg7: memref<4x16x1xf32, #tpu.memory_space<vmem>>, %arg8: memref<1x8xf32, #tpu.memory_space<vmem>>, %arg9: memref<1x1xf32, #tpu.memory_space<vmem>>, %arg10: memref<16x128xf32, #tpu.memory_space<vmem>>) attributes {dimension_semantics = [], scalar_prefetch = 0 : i64, scratch_operands = 1 : i64, tpu.core_type = #tpu.core_type<tc>} {
    %0 = tpu.iota {dimensions = array<i32: 1>} : vector<1x128xi32>
    %c15_i32 = arith.constant 15 : i32
    %1 = vector.broadcast %c15_i32 : i32 to vector<1x128xi32>
    %2 = arith.andi %0, %1 : vector<1x128xi32>
    %c0_i32 = arith.constant 0 : i32
    %3 = vector.broadcast %c0_i32 : i32 to vector<1x128xi32>
    %4 = arith.cmpi eq, %2, %3 : vector<1x128xi32>
    %c15_i32_0 = arith.constant 15 : i32
    %5 = vector.broadcast %c15_i32_0 : i32 to vector<1x128xi32>
    %6 = arith.cmpi eq, %2, %5 : vector<1x128xi32>
    %7 = tpu.iota {dimensions = array<i32: 1>} : vector<8x128xi32>
    %8 = tpu.iota {dimensions = array<i32: 0>} : vector<8x128xi32>
    %c16_i32 = arith.constant 16 : i32
    %9 = vector.broadcast %c16_i32 : i32 to vector<8x128xi32>
    %10 = arith.muli %8, %9 : vector<8x128xi32>
    %11 = arith.cmpi sge, %7, %10 : vector<8x128xi32>
    %c1_i32 = arith.constant 1 : i32
    %12 = vector.broadcast %c1_i32 : i32 to vector<8x128xi32>
    %13 = arith.addi %8, %12 : vector<8x128xi32>
    %c16_i32_1 = arith.constant 16 : i32
    %14 = vector.broadcast %c16_i32_1 : i32 to vector<8x128xi32>
    %15 = arith.muli %13, %14 : vector<8x128xi32>
    %16 = arith.cmpi slt, %7, %15 : vector<8x128xi32>
    %17 = arith.andi %11, %16 : vector<8x128xi1>
    %18 = arith.extui %17 : vector<8x128xi1> to vector<8x128xi32>
    %19 = arith.sitofp %18 : vector<8x128xi32> to vector<8x128xf32>
    %c0 = arith.constant 0 : index
    %c0_2 = arith.constant 0 : index
    %20 = vector.load %arg4[%c0, %c0_2] : memref<24x48xf32, #tpu.memory_space<vmem>>, vector<8x48xf32>
    %c8 = arith.constant 8 : index
    %c0_3 = arith.constant 0 : index
    %21 = vector.load %arg4[%c8, %c0_3] : memref<24x48xf32, #tpu.memory_space<vmem>>, vector<16x48xf32>
    %c0_4 = arith.constant 0 : index
    %c0_5 = arith.constant 0 : index
    %22 = vector.load %arg5[%c0_4, %c0_5] : memref<2x48xf32, #tpu.memory_space<vmem>>, vector<1x48xf32>
    %c1 = arith.constant 1 : index
    %c0_6 = arith.constant 0 : index
    %23 = vector.load %arg5[%c1, %c0_6] : memref<2x48xf32, #tpu.memory_space<vmem>>, vector<1x48xf32>
    %c0_7 = arith.constant 0 : index
    %c0_8 = arith.constant 0 : index
    %24 = vector.load %arg0[%c0_7, %c0_8] : memref<8x8xf32, #tpu.memory_space<vmem>>, vector<8x8xf32>
    %cst = arith.constant dense<0.000000e+00> : vector<8x48xf32>
    %25 = tpu.matmul %24, %20, %cst {dimension_numbers = #tpu.dot_dimension_numbers<[1], [0], [0], [1], [0, 0, 1, 1], [], []>} : vector<8x8xf32>, vector<8x48xf32>, vector<8x48xf32> -> vector<8x48xf32>
    %26 = vector.broadcast %22 : vector<1x48xf32> to vector<8x48xf32>
    %27 = arith.addf %25, %26 : vector<8x48xf32>
    %cst_9 = arith.constant 0.000000e+00 : f32
    %28 = vector.broadcast %cst_9 : f32 to vector<2x16xf32>
    %29 = vector.extract_strided_slice %27 {offsets = [0, 0], sizes = [2, 48], strides = [1, 1]} : vector<8x48xf32> to vector<2x48xf32>
    %cst_10 = arith.constant dense<0.000000e+00> : vector<2x48xf32>
    %30 = tpu.matmul %28, %21, %cst_10 {dimension_numbers = #tpu.dot_dimension_numbers<[1], [0], [0], [1], [0, 0, 1, 1], [], []>} : vector<2x16xf32>, vector<16x48xf32>, vector<2x48xf32> -> vector<2x48xf32>
    %31 = vector.broadcast %23 : vector<1x48xf32> to vector<2x48xf32>
    %32 = arith.addf %30, %31 : vector<2x48xf32>
    %33 = vector.extract_strided_slice %29 {offsets = [0, 0], sizes = [2, 16], strides = [1, 1]} : vector<2x48xf32> to vector<2x16xf32>
    %34 = vector.extract_strided_slice %32 {offsets = [0, 0], sizes = [2, 16], strides = [1, 1]} : vector<2x48xf32> to vector<2x16xf32>
    %35 = arith.addf %33, %34 : vector<2x16xf32>
    %36 = arith.negf %35 : vector<2x16xf32>
    %37 = math.exp %36 : vector<2x16xf32>
    %cst_11 = arith.constant 1.000000e+00 : f32
    %38 = vector.broadcast %cst_11 : f32 to vector<2x16xf32>
    %39 = arith.addf %38, %37 : vector<2x16xf32>
    %40 = arith.divf %38, %39 : vector<2x16xf32>
    %41 = vector.extract_strided_slice %29 {offsets = [0, 16], sizes = [2, 16], strides = [1, 1]} : vector<2x48xf32> to vector<2x16xf32>
    %42 = vector.extract_strided_slice %32 {offsets = [0, 16], sizes = [2, 16], strides = [1, 1]} : vector<2x48xf32> to vector<2x16xf32>
    %43 = arith.addf %41, %42 : vector<2x16xf32>
    %44 = arith.negf %43 : vector<2x16xf32>
    %45 = math.exp %44 : vector<2x16xf32>
    %cst_12 = arith.constant 1.000000e+00 : f32
    %46 = vector.broadcast %cst_12 : f32 to vector<2x16xf32>
    %47 = arith.addf %46, %45 : vector<2x16xf32>
    %48 = arith.divf %46, %47 : vector<2x16xf32>
    %49 = vector.extract_strided_slice %29 {offsets = [0, 32], sizes = [2, 16], strides = [1, 1]} : vector<2x48xf32> to vector<2x16xf32>
    %50 = vector.extract_strided_slice %32 {offsets = [0, 32], sizes = [2, 16], strides = [1, 1]} : vector<2x48xf32> to vector<2x16xf32>
    %51 = arith.mulf %40, %50 : vector<2x16xf32>
    %52 = arith.addf %49, %51 : vector<2x16xf32>
    %53 = math.tanh %52 : vector<2x16xf32>
    %cst_13 = arith.constant 1.000000e+00 : f32
    %54 = vector.broadcast %cst_13 : f32 to vector<2x16xf32>
    %55 = arith.subf %54, %48 : vector<2x16xf32>
    %56 = arith.mulf %55, %53 : vector<2x16xf32>
    %57 = arith.mulf %48, %28 : vector<2x16xf32>
    %58 = arith.addf %56, %57 : vector<2x16xf32>
    %cst_14 = arith.constant 5.000000e-01 : f32
    %59 = vector.broadcast %cst_14 : f32 to vector<2x16xf32>
    %60 = arith.mulf %58, %59 : vector<2x16xf32>
    %61 = vector.extract_strided_slice %60 {offsets = [0, 0], sizes = [1, 16], strides = [1, 1]} : vector<2x16xf32> to vector<1x16xf32>
    %c8_15 = arith.constant 8 : index
    %c0_16 = arith.constant 0 : index
    %62 = vector.load %arg10[%c8_15, %c0_16] : memref<16x128xf32, #tpu.memory_space<vmem>>, vector<1x16xf32>
    tpu.vector_store %arg10[%c8_15, %c0_16], %61 {strides = array<i32>} : memref<16x128xf32, #tpu.memory_space<vmem>>, vector<1x16xf32>,
    %63 = vector.extract_strided_slice %60 {offsets = [1, 0], sizes = [1, 16], strides = [1, 1]} : vector<2x16xf32> to vector<1x16xf32>
    %c8_17 = arith.constant 8 : index
    %c64 = arith.constant 64 : index
    %64 = vector.load %arg10[%c8_17, %c64] : memref<16x128xf32, #tpu.memory_space<vmem>>, vector<1x16xf32>
    tpu.vector_store %arg10[%c8_17, %c64], %63 {strides = array<i32>} : memref<16x128xf32, #tpu.memory_space<vmem>>, vector<1x16xf32>,
    %65 = vector.extract_strided_slice %27 {offsets = [2, 0], sizes = [2, 48], strides = [1, 1]} : vector<8x48xf32> to vector<2x48xf32>
    %cst_18 = arith.constant dense<0.000000e+00> : vector<2x48xf32>
    %66 = tpu.matmul %58, %21, %cst_18 {dimension_numbers = #tpu.dot_dimension_numbers<[1], [0], [0], [1], [0, 0, 1, 1], [], []>} : vector<2x16xf32>, vector<16x48xf32>, vector<2x48xf32> -> vector<2x48xf32>
    %67 = vector.broadcast %23 : vector<1x48xf32> to vector<2x48xf32>
    %68 = arith.addf %66, %67 : vector<2x48xf32>
    %69 = vector.extract_strided_slice %65 {offsets = [0, 0], sizes = [2, 16], strides = [1, 1]} : vector<2x48xf32> to vector<2x16xf32>
    %70 = vector.extract_strided_slice %68 {offsets = [0, 0], sizes = [2, 16], strides = [1, 1]} : vector<2x48xf32> to vector<2x16xf32>
    %71 = arith.addf %69, %70 : vector<2x16xf32>
    %72 = arith.negf %71 : vector<2x16xf32>
    %73 = math.exp %72 : vector<2x16xf32>
    %cst_19 = arith.constant 1.000000e+00 : f32
    %74 = vector.broadcast %cst_19 : f32 to vector<2x16xf32>
    %75 = arith.addf %74, %73 : vector<2x16xf32>
    %76 = arith.divf %74, %75 : vector<2x16xf32>
    %77 = vector.extract_strided_slice %65 {offsets = [0, 16], sizes = [2, 16], strides = [1, 1]} : vector<2x48xf32> to vector<2x16xf32>
    %78 = vector.extract_strided_slice %68 {offsets = [0, 16], sizes = [2, 16], strides = [1, 1]} : vector<2x48xf32> to vector<2x16xf32>
    %79 = arith.addf %77, %78 : vector<2x16xf32>
    %80 = arith.negf %79 : vector<2x16xf32>
    %81 = math.exp %80 : vector<2x16xf32>
    %cst_20 = arith.constant 1.000000e+00 : f32
    %82 = vector.broadcast %cst_20 : f32 to vector<2x16xf32>
    %83 = arith.addf %82, %81 : vector<2x16xf32>
    %84 = arith.divf %82, %83 : vector<2x16xf32>
    %85 = vector.extract_strided_slice %65 {offsets = [0, 32], sizes = [2, 16], strides = [1, 1]} : vector<2x48xf32> to vector<2x16xf32>
    %86 = vector.extract_strided_slice %68 {offsets = [0, 32], sizes = [2, 16], strides = [1, 1]} : vector<2x48xf32> to vector<2x16xf32>
    %87 = arith.mulf %76, %86 : vector<2x16xf32>
    %88 = arith.addf %85, %87 : vector<2x16xf32>
    %89 = math.tanh %88 : vector<2x16xf32>
    %cst_21 = arith.constant 1.000000e+00 : f32
    %90 = vector.broadcast %cst_21 : f32 to vector<2x16xf32>
    %91 = arith.subf %90, %84 : vector<2x16xf32>
    %92 = arith.mulf %91, %89 : vector<2x16xf32>
    %93 = arith.mulf %84, %58 : vector<2x16xf32>
    %94 = arith.addf %92, %93 : vector<2x16xf32>
    %cst_22 = arith.constant 5.000000e-01 : f32
    %95 = vector.broadcast %cst_22 : f32 to vector<2x16xf32>
    %96 = arith.mulf %94, %95 : vector<2x16xf32>
    %97 = vector.extract_strided_slice %96 {offsets = [0, 0], sizes = [1, 16], strides = [1, 1]} : vector<2x16xf32> to vector<1x16xf32>
    %c8_23 = arith.constant 8 : index
    %c16 = arith.constant 16 : index
    %98 = vector.load %arg10[%c8_23, %c16] : memref<16x128xf32, #tpu.memory_space<vmem>>, vector<1x16xf32>
    tpu.vector_store %arg10[%c8_23, %c16], %97 {strides = array<i32>} : memref<16x128xf32, #tpu.memory_space<vmem>>, vector<1x16xf32>,
    %99 = vector.extract_strided_slice %96 {offsets = [1, 0], sizes = [1, 16], strides = [1, 1]} : vector<2x16xf32> to vector<1x16xf32>
    %c8_24 = arith.constant 8 : index
    %c80 = arith.constant 80 : index
    %100 = vector.load %arg10[%c8_24, %c80] : memref<16x128xf32, #tpu.memory_space<vmem>>, vector<1x16xf32>
    tpu.vector_store %arg10[%c8_24, %c80], %99 {strides = array<i32>} : memref<16x128xf32, #tpu.memory_space<vmem>>, vector<1x16xf32>,
    %101 = vector.extract_strided_slice %27 {offsets = [4, 0], sizes = [2, 48], strides = [1, 1]} : vector<8x48xf32> to vector<2x48xf32>
    %cst_25 = arith.constant dense<0.000000e+00> : vector<2x48xf32>
    %102 = tpu.matmul %94, %21, %cst_25 {dimension_numbers = #tpu.dot_dimension_numbers<[1], [0], [0], [1], [0, 0, 1, 1], [], []>} : vector<2x16xf32>, vector<16x48xf32>, vector<2x48xf32> -> vector<2x48xf32>
    %103 = vector.broadcast %23 : vector<1x48xf32> to vector<2x48xf32>
    %104 = arith.addf %102, %103 : vector<2x48xf32>
    %105 = vector.extract_strided_slice %101 {offsets = [0, 0], sizes = [2, 16], strides = [1, 1]} : vector<2x48xf32> to vector<2x16xf32>
    %106 = vector.extract_strided_slice %104 {offsets = [0, 0], sizes = [2, 16], strides = [1, 1]} : vector<2x48xf32> to vector<2x16xf32>
    %107 = arith.addf %105, %106 : vector<2x16xf32>
    %108 = arith.negf %107 : vector<2x16xf32>
    %109 = math.exp %108 : vector<2x16xf32>
    %cst_26 = arith.constant 1.000000e+00 : f32
    %110 = vector.broadcast %cst_26 : f32 to vector<2x16xf32>
    %111 = arith.addf %110, %109 : vector<2x16xf32>
    %112 = arith.divf %110, %111 : vector<2x16xf32>
    %113 = vector.extract_strided_slice %101 {offsets = [0, 16], sizes = [2, 16], strides = [1, 1]} : vector<2x48xf32> to vector<2x16xf32>
    %114 = vector.extract_strided_slice %104 {offsets = [0, 16], sizes = [2, 16], strides = [1, 1]} : vector<2x48xf32> to vector<2x16xf32>
    %115 = arith.addf %113, %114 : vector<2x16xf32>
    %116 = arith.negf %115 : vector<2x16xf32>
    %117 = math.exp %116 : vector<2x16xf32>
    %cst_27 = arith.constant 1.000000e+00 : f32
    %118 = vector.broadcast %cst_27 : f32 to vector<2x16xf32>
    %119 = arith.addf %118, %117 : vector<2x16xf32>
    %120 = arith.divf %118, %119 : vector<2x16xf32>
    %121 = vector.extract_strided_slice %101 {offsets = [0, 32], sizes = [2, 16], strides = [1, 1]} : vector<2x48xf32> to vector<2x16xf32>
    %122 = vector.extract_strided_slice %104 {offsets = [0, 32], sizes = [2, 16], strides = [1, 1]} : vector<2x48xf32> to vector<2x16xf32>
    %123 = arith.mulf %112, %122 : vector<2x16xf32>
    %124 = arith.addf %121, %123 : vector<2x16xf32>
    %125 = math.tanh %124 : vector<2x16xf32>
    %cst_28 = arith.constant 1.000000e+00 : f32
    %126 = vector.broadcast %cst_28 : f32 to vector<2x16xf32>
    %127 = arith.subf %126, %120 : vector<2x16xf32>
    %128 = arith.mulf %127, %125 : vector<2x16xf32>
    %129 = arith.mulf %120, %94 : vector<2x16xf32>
    %130 = arith.addf %128, %129 : vector<2x16xf32>
    %cst_29 = arith.constant 5.000000e-01 : f32
    %131 = vector.broadcast %cst_29 : f32 to vector<2x16xf32>
    %132 = arith.mulf %130, %131 : vector<2x16xf32>
    %133 = vector.extract_strided_slice %132 {offsets = [0, 0], sizes = [1, 16], strides = [1, 1]} : vector<2x16xf32> to vector<1x16xf32>
    %c8_30 = arith.constant 8 : index
    %c32 = arith.constant 32 : index
    %134 = vector.load %arg10[%c8_30, %c32] : memref<16x128xf32, #tpu.memory_space<vmem>>, vector<1x16xf32>
    tpu.vector_store %arg10[%c8_30, %c32], %133 {strides = array<i32>} : memref<16x128xf32, #tpu.memory_space<vmem>>, vector<1x16xf32>,
    %135 = vector.extract_strided_slice %132 {offsets = [1, 0], sizes = [1, 16], strides = [1, 1]} : vector<2x16xf32> to vector<1x16xf32>
    %c8_31 = arith.constant 8 : index
    %c96 = arith.constant 96 : index
    %136 = vector.load %arg10[%c8_31, %c96] : memref<16x128xf32, #tpu.memory_space<vmem>>, vector<1x16xf32>
    tpu.vector_store %arg10[%c8_31, %c96], %135 {strides = array<i32>} : memref<16x128xf32, #tpu.memory_space<vmem>>, vector<1x16xf32>,
    %137 = vector.extract_strided_slice %27 {offsets = [6, 0], sizes = [2, 48], strides = [1, 1]} : vector<8x48xf32> to vector<2x48xf32>
    %cst_32 = arith.constant dense<0.000000e+00> : vector<2x48xf32>
    %138 = tpu.matmul %130, %21, %cst_32 {dimension_numbers = #tpu.dot_dimension_numbers<[1], [0], [0], [1], [0, 0, 1, 1], [], []>} : vector<2x16xf32>, vector<16x48xf32>, vector<2x48xf32> -> vector<2x48xf32>
    %139 = vector.broadcast %23 : vector<1x48xf32> to vector<2x48xf32>
    %140 = arith.addf %138, %139 : vector<2x48xf32>
    %141 = vector.extract_strided_slice %137 {offsets = [0, 0], sizes = [2, 16], strides = [1, 1]} : vector<2x48xf32> to vector<2x16xf32>
    %142 = vector.extract_strided_slice %140 {offsets = [0, 0], sizes = [2, 16], strides = [1, 1]} : vector<2x48xf32> to vector<2x16xf32>
    %143 = arith.addf %141, %142 : vector<2x16xf32>
    %144 = arith.negf %143 : vector<2x16xf32>
    %145 = math.exp %144 : vector<2x16xf32>
    %cst_33 = arith.constant 1.000000e+00 : f32
    %146 = vector.broadcast %cst_33 : f32 to vector<2x16xf32>
    %147 = arith.addf %146, %145 : vector<2x16xf32>
    %148 = arith.divf %146, %147 : vector<2x16xf32>
    %149 = vector.extract_strided_slice %137 {offsets = [0, 16], sizes = [2, 16], strides = [1, 1]} : vector<2x48xf32> to vector<2x16xf32>
    %150 = vector.extract_strided_slice %140 {offsets = [0, 16], sizes = [2, 16], strides = [1, 1]} : vector<2x48xf32> to vector<2x16xf32>
    %151 = arith.addf %149, %150 : vector<2x16xf32>
    %152 = arith.negf %151 : vector<2x16xf32>
    %153 = math.exp %152 : vector<2x16xf32>
    %cst_34 = arith.constant 1.000000e+00 : f32
    %154 = vector.broadcast %cst_34 : f32 to vector<2x16xf32>
    %155 = arith.addf %154, %153 : vector<2x16xf32>
    %156 = arith.divf %154, %155 : vector<2x16xf32>
    %157 = vector.extract_strided_slice %137 {offsets = [0, 32], sizes = [2, 16], strides = [1, 1]} : vector<2x48xf32> to vector<2x16xf32>
    %158 = vector.extract_strided_slice %140 {offsets = [0, 32], sizes = [2, 16], strides = [1, 1]} : vector<2x48xf32> to vector<2x16xf32>
    %159 = arith.mulf %148, %158 : vector<2x16xf32>
    %160 = arith.addf %157, %159 : vector<2x16xf32>
    %161 = math.tanh %160 : vector<2x16xf32>
    %cst_35 = arith.constant 1.000000e+00 : f32
    %162 = vector.broadcast %cst_35 : f32 to vector<2x16xf32>
    %163 = arith.subf %162, %156 : vector<2x16xf32>
    %164 = arith.mulf %163, %161 : vector<2x16xf32>
    %165 = arith.mulf %156, %130 : vector<2x16xf32>
    %166 = arith.addf %164, %165 : vector<2x16xf32>
    %cst_36 = arith.constant 5.000000e-01 : f32
    %167 = vector.broadcast %cst_36 : f32 to vector<2x16xf32>
    %168 = arith.mulf %166, %167 : vector<2x16xf32>
    %169 = vector.extract_strided_slice %168 {offsets = [0, 0], sizes = [1, 16], strides = [1, 1]} : vector<2x16xf32> to vector<1x16xf32>
    %c8_37 = arith.constant 8 : index
    %c48 = arith.constant 48 : index
    %170 = vector.load %arg10[%c8_37, %c48] : memref<16x128xf32, #tpu.memory_space<vmem>>, vector<1x16xf32>
    tpu.vector_store %arg10[%c8_37, %c48], %169 {strides = array<i32>} : memref<16x128xf32, #tpu.memory_space<vmem>>, vector<1x16xf32>,
    %171 = vector.extract_strided_slice %168 {offsets = [1, 0], sizes = [1, 16], strides = [1, 1]} : vector<2x16xf32> to vector<1x16xf32>
    %c8_38 = arith.constant 8 : index
    %c112 = arith.constant 112 : index
    %172 = vector.load %arg10[%c8_38, %c112] : memref<16x128xf32, #tpu.memory_space<vmem>>, vector<1x16xf32>
    tpu.vector_store %arg10[%c8_38, %c112], %171 {strides = array<i32>} : memref<16x128xf32, #tpu.memory_space<vmem>>, vector<1x16xf32>,
    %c0_39 = arith.constant 0 : index
    %c0_40 = arith.constant 0 : index
    %173 = vector.load %arg3[%c0_39, %c0_40] : memref<1x8xf32, #tpu.memory_space<vmem>>, vector<1x8xf32>
    %cst_41 = arith.constant dense<0.000000e+00> : vector<1x128xf32>
    %174 = tpu.matmul %173, %19, %cst_41 {dimension_numbers = #tpu.dot_dimension_numbers<[1], [0], [0], [1], [0, 0, 1, 1], [], []>} : vector<1x8xf32>, vector<8x128xf32>, vector<1x128xf32> -> vector<1x128xf32>
    %cst_42 = arith.constant -2.500000e-01 : f32
    %175 = vector.broadcast %cst_42 : f32 to vector<1x128xf32>
    %176 = arith.mulf %175, %174 : vector<1x128xf32>
    %177 = arith.mulf %176, %174 : vector<1x128xf32>
    %cst_43 = arith.constant 1.990000e+01 : f32
    %178 = vector.broadcast %cst_43 : f32 to vector<1x128xf32>
    %179 = arith.mulf %177, %178 : vector<1x128xf32>
    %cst_44 = arith.constant 5.000000e-01 : f32
    %180 = vector.broadcast %cst_44 : f32 to vector<1x128xf32>
    %181 = arith.mulf %180, %174 : vector<1x128xf32>
    %cst_45 = arith.constant 1.000000e-01 : f32
    %182 = vector.broadcast %cst_45 : f32 to vector<1x128xf32>
    %183 = arith.mulf %181, %182 : vector<1x128xf32>
    %184 = arith.subf %179, %183 : vector<1x128xf32>
    %185 = math.exp %184 : vector<1x128xf32>
    %cst_46 = arith.constant 2.000000e+00 : f32
    %186 = vector.broadcast %cst_46 : f32 to vector<1x128xf32>
    %187 = arith.mulf %186, %184 : vector<1x128xf32>
    %cst_47 = arith.constant -1.000000e-03 : f32
    %188 = vector.broadcast %cst_47 : f32 to vector<1x128xf32>
    %189 = arith.cmpf ogt, %187, %188 : vector<1x128xf32>
    %cst_48 = arith.constant 0.000000e+00 : f32
    %190 = vector.broadcast %cst_48 : f32 to vector<1x128xf32>
    %191 = arith.subf %190, %187 : vector<1x128xf32>
    %cst_49 = arith.constant 5.000000e-01 : f32
    %192 = vector.broadcast %cst_49 : f32 to vector<1x128xf32>
    %193 = arith.mulf %192, %187 : vector<1x128xf32>
    %cst_50 = arith.constant 1.000000e+00 : f32
    %194 = vector.broadcast %cst_50 : f32 to vector<1x128xf32>
    %195 = arith.addf %194, %193 : vector<1x128xf32>
    %196 = arith.mulf %191, %195 : vector<1x128xf32>
    %197 = arith.mulf %185, %185 : vector<1x128xf32>
    %cst_51 = arith.constant 1.000000e+00 : f32
    %198 = vector.broadcast %cst_51 : f32 to vector<1x128xf32>
    %199 = arith.subf %198, %197 : vector<1x128xf32>
    %200 = arith.select %189, %196, %199 : vector<1x128xi1>, vector<1x128xf32>
    %cst_52 = arith.constant 0.000000e+00 : f32
    %201 = vector.broadcast %cst_52 : f32 to vector<1x128xf32>
    %202 = arith.maximumf %200, %201 : vector<1x128xf32>
    %203 = math.sqrt %202 : vector<1x128xf32>
    %c0_53 = arith.constant 0 : index
    %c0_54 = arith.constant 0 : index
    %204 = vector.load %arg2[%c0_53, %c0_54] : memref<8x128xf32, #tpu.memory_space<vmem>>, vector<8x128xf32>
    %c0_55 = arith.constant 0 : index
    %c0_56 = arith.constant 0 : index
    %205 = vector.load %arg1[%c0_55, %c0_56] : memref<8x128xf32, #tpu.memory_space<vmem>>, vector<8x128xf32>
    %206 = vector.broadcast %185 : vector<1x128xf32> to vector<8x128xf32>
    %207 = arith.mulf %206, %205 : vector<8x128xf32>
    %208 = vector.broadcast %203 : vector<1x128xf32> to vector<8x128xf32>
    %209 = arith.mulf %208, %204 : vector<8x128xf32>
    %210 = arith.addf %207, %209 : vector<8x128xf32>
    %c0_57 = arith.constant 0 : index
    %c0_58 = arith.constant 0 : index
    %211 = vector.load %arg10[%c0_57, %c0_58] : memref<16x128xf32, #tpu.memory_space<vmem>>, vector<8x128xf32>
    tpu.vector_store %arg10[%c0_57, %c0_58], %210 {strides = array<i32>} : memref<16x128xf32, #tpu.memory_space<vmem>>, vector<8x128xf32>,
    %c9 = arith.constant 9 : index
    %c0_59 = arith.constant 0 : index
    %212 = vector.load %arg10[%c9, %c0_59] : memref<16x128xf32, #tpu.memory_space<vmem>>, vector<1x128xf32>
    tpu.vector_store %arg10[%c9, %c0_59], %174 {strides = array<i32>} : memref<16x128xf32, #tpu.memory_space<vmem>>, vector<1x128xf32>,
    %cst_60 = arith.constant 0.000000e+00 : f32
    %213 = vector.broadcast %cst_60 : f32 to vector<6x128xf32>
    %c10 = arith.constant 10 : index
    %c0_61 = arith.constant 0 : index
    %214 = vector.load %arg10[%c10, %c0_61] : memref<16x128xf32, #tpu.memory_space<vmem>>, vector<6x128xf32>
    tpu.vector_store %arg10[%c10, %c0_61], %213 {strides = array<i32>} : memref<16x128xf32, #tpu.memory_space<vmem>>, vector<6x128xf32>,
    %c0_62 = arith.constant 0 : index
    %c0_63 = arith.constant 0 : index
    %215 = vector.load %arg10[%c0_62, %c0_63] : memref<16x128xf32, #tpu.memory_space<vmem>>, vector<16x128xf32>
    %c1_i32_64 = arith.constant 1 : i32
    %216 = tpu.dynamic_rotate %215 by %c1_i32_64 dim 1 : vector<16x128xf32>, i32 -> vector<16x128xf32>
    %cst_65 = arith.constant 0.000000e+00 : f32
    %217 = vector.shape_cast %4 : vector<1x128xi1> to vector<1x128xi1>
    %218 = vector.broadcast %217 : vector<1x128xi1> to vector<16x128xi1>
    %219 = vector.broadcast %cst_65 : f32 to vector<16x128xf32>
    %220 = arith.select %218, %219, %216 : vector<16x128xi1>, vector<16x128xf32>
    %c127_i32 = arith.constant 127 : i32
    %221 = tpu.dynamic_rotate %215 by %c127_i32 dim 1 : vector<16x128xf32>, i32 -> vector<16x128xf32>
    %cst_66 = arith.constant 0.000000e+00 : f32
    %222 = vector.shape_cast %6 : vector<1x128xi1> to vector<1x128xi1>
    %223 = vector.broadcast %222 : vector<1x128xi1> to vector<16x128xi1>
    %224 = vector.broadcast %cst_66 : f32 to vector<16x128xf32>
    %225 = arith.select %223, %224, %221 : vector<16x128xi1>, vector<16x128xf32>
    %c0_67 = arith.constant 0 : index
    %c0_68 = arith.constant 0 : index
    %c0_69 = arith.constant 0 : index
    %c0_70 = arith.constant 0 : index
    %226 = vector.load %arg6[%c0_67, %c0_68, %c0_69, %c0_70] : memref<4x3x16x16xf32, #tpu.memory_space<vmem>>, vector<1x1x16x16xf32>
    %227 = vector.shape_cast %226 : vector<1x1x16x16xf32> to vector<16x16xf32>
    %cst_71 = arith.constant dense<0.000000e+00> : vector<16x128xf32>
    %228 = tpu.matmul %227, %220, %cst_71 {dimension_numbers = #tpu.dot_dimension_numbers<[1], [0], [0], [1], [0, 0, 1, 1], [], []>} : vector<16x16xf32>, vector<16x128xf32>, vector<16x128xf32> -> vector<16x128xf32>
    %c0_72 = arith.constant 0 : index
    %c1_73 = arith.constant 1 : index
    %c0_74 = arith.constant 0 : index
    %c0_75 = arith.constant 0 : index
    %229 = vector.load %arg6[%c0_72, %c1_73, %c0_74, %c0_75] : memref<4x3x16x16xf32, #tpu.memory_space<vmem>>, vector<1x1x16x16xf32>
    %230 = vector.shape_cast %229 : vector<1x1x16x16xf32> to vector<16x16xf32>
    %cst_76 = arith.constant dense<0.000000e+00> : vector<16x128xf32>
    %231 = tpu.matmul %230, %215, %cst_76 {dimension_numbers = #tpu.dot_dimension_numbers<[1], [0], [0], [1], [0, 0, 1, 1], [], []>} : vector<16x16xf32>, vector<16x128xf32>, vector<16x128xf32> -> vector<16x128xf32>
    %232 = arith.addf %228, %231 : vector<16x128xf32>
    %c0_77 = arith.constant 0 : index
    %c2 = arith.constant 2 : index
    %c0_78 = arith.constant 0 : index
    %c0_79 = arith.constant 0 : index
    %233 = vector.load %arg6[%c0_77, %c2, %c0_78, %c0_79] : memref<4x3x16x16xf32, #tpu.memory_space<vmem>>, vector<1x1x16x16xf32>
    %234 = vector.shape_cast %233 : vector<1x1x16x16xf32> to vector<16x16xf32>
    %cst_80 = arith.constant dense<0.000000e+00> : vector<16x128xf32>
    %235 = tpu.matmul %234, %225, %cst_80 {dimension_numbers = #tpu.dot_dimension_numbers<[1], [0], [0], [1], [0, 0, 1, 1], [], []>} : vector<16x16xf32>, vector<16x128xf32>, vector<16x128xf32> -> vector<16x128xf32>
    %236 = arith.addf %232, %235 : vector<16x128xf32>
    %c0_81 = arith.constant 0 : index
    %c0_82 = arith.constant 0 : index
    %c0_83 = arith.constant 0 : index
    %237 = vector.load %arg7[%c0_81, %c0_82, %c0_83] : memref<4x16x1xf32, #tpu.memory_space<vmem>>, vector<1x16x1xf32>
    %238 = vector.shape_cast %237 : vector<1x16x1xf32> to vector<16x1xf32>
    %239 = vector.broadcast %238 : vector<16x1xf32> to vector<16x128xf32>
    %240 = arith.addf %236, %239 : vector<16x128xf32>
    %241 = arith.negf %240 : vector<16x128xf32>
    %242 = math.exp %241 : vector<16x128xf32>
    %cst_84 = arith.constant 1.000000e+00 : f32
    %243 = vector.broadcast %cst_84 : f32 to vector<16x128xf32>
    %244 = arith.addf %243, %242 : vector<16x128xf32>
    %245 = arith.divf %243, %244 : vector<16x128xf32>
    %246 = arith.mulf %240, %245 : vector<16x128xf32>
    %c1_i32_85 = arith.constant 1 : i32
    %247 = tpu.dynamic_rotate %246 by %c1_i32_85 dim 1 : vector<16x128xf32>, i32 -> vector<16x128xf32>
    %cst_86 = arith.constant 0.000000e+00 : f32
    %248 = vector.shape_cast %4 : vector<1x128xi1> to vector<1x128xi1>
    %249 = vector.broadcast %248 : vector<1x128xi1> to vector<16x128xi1>
    %250 = vector.broadcast %cst_86 : f32 to vector<16x128xf32>
    %251 = arith.select %249, %250, %247 : vector<16x128xi1>, vector<16x128xf32>
    %c127_i32_87 = arith.constant 127 : i32
    %252 = tpu.dynamic_rotate %246 by %c127_i32_87 dim 1 : vector<16x128xf32>, i32 -> vector<16x128xf32>
    %cst_88 = arith.constant 0.000000e+00 : f32
    %253 = vector.shape_cast %6 : vector<1x128xi1> to vector<1x128xi1>
    %254 = vector.broadcast %253 : vector<1x128xi1> to vector<16x128xi1>
    %255 = vector.broadcast %cst_88 : f32 to vector<16x128xf32>
    %256 = arith.select %254, %255, %252 : vector<16x128xi1>, vector<16x128xf32>
    %c1_89 = arith.constant 1 : index
    %c0_90 = arith.constant 0 : index
    %c0_91 = arith.constant 0 : index
    %c0_92 = arith.constant 0 : index
    %257 = vector.load %arg6[%c1_89, %c0_90, %c0_91, %c0_92] : memref<4x3x16x16xf32, #tpu.memory_space<vmem>>, vector<1x1x16x16xf32>
    %258 = vector.shape_cast %257 : vector<1x1x16x16xf32> to vector<16x16xf32>
    %cst_93 = arith.constant dense<0.000000e+00> : vector<16x128xf32>
    %259 = tpu.matmul %258, %251, %cst_93 {dimension_numbers = #tpu.dot_dimension_numbers<[1], [0], [0], [1], [0, 0, 1, 1], [], []>} : vector<16x16xf32>, vector<16x128xf32>, vector<16x128xf32> -> vector<16x128xf32>
    %c1_94 = arith.constant 1 : index
    %c1_95 = arith.constant 1 : index
    %c0_96 = arith.constant 0 : index
    %c0_97 = arith.constant 0 : index
    %260 = vector.load %arg6[%c1_94, %c1_95, %c0_96, %c0_97] : memref<4x3x16x16xf32, #tpu.memory_space<vmem>>, vector<1x1x16x16xf32>
    %261 = vector.shape_cast %260 : vector<1x1x16x16xf32> to vector<16x16xf32>
    %cst_98 = arith.constant dense<0.000000e+00> : vector<16x128xf32>
    %262 = tpu.matmul %261, %246, %cst_98 {dimension_numbers = #tpu.dot_dimension_numbers<[1], [0], [0], [1], [0, 0, 1, 1], [], []>} : vector<16x16xf32>, vector<16x128xf32>, vector<16x128xf32> -> vector<16x128xf32>
    %263 = arith.addf %259, %262 : vector<16x128xf32>
    %c1_99 = arith.constant 1 : index
    %c2_100 = arith.constant 2 : index
    %c0_101 = arith.constant 0 : index
    %c0_102 = arith.constant 0 : index
    %264 = vector.load %arg6[%c1_99, %c2_100, %c0_101, %c0_102] : memref<4x3x16x16xf32, #tpu.memory_space<vmem>>, vector<1x1x16x16xf32>
    %265 = vector.shape_cast %264 : vector<1x1x16x16xf32> to vector<16x16xf32>
    %cst_103 = arith.constant dense<0.000000e+00> : vector<16x128xf32>
    %266 = tpu.matmul %265, %256, %cst_103 {dimension_numbers = #tpu.dot_dimension_numbers<[1], [0], [0], [1], [0, 0, 1, 1], [], []>} : vector<16x16xf32>, vector<16x128xf32>, vector<16x128xf32> -> vector<16x128xf32>
    %267 = arith.addf %263, %266 : vector<16x128xf32>
    %c1_104 = arith.constant 1 : index
    %c0_105 = arith.constant 0 : index
    %c0_106 = arith.constant 0 : index
    %268 = vector.load %arg7[%c1_104, %c0_105, %c0_106] : memref<4x16x1xf32, #tpu.memory_space<vmem>>, vector<1x16x1xf32>
    %269 = vector.shape_cast %268 : vector<1x16x1xf32> to vector<16x1xf32>
    %270 = vector.broadcast %269 : vector<16x1xf32> to vector<16x128xf32>
    %271 = arith.addf %267, %270 : vector<16x128xf32>
    %272 = arith.negf %271 : vector<16x128xf32>
    %273 = math.exp %272 : vector<16x128xf32>
    %cst_107 = arith.constant 1.000000e+00 : f32
    %274 = vector.broadcast %cst_107 : f32 to vector<16x128xf32>
    %275 = arith.addf %274, %273 : vector<16x128xf32>
    %276 = arith.divf %274, %275 : vector<16x128xf32>
    %277 = arith.mulf %271, %276 : vector<16x128xf32>
    %c1_i32_108 = arith.constant 1 : i32
    %278 = tpu.dynamic_rotate %277 by %c1_i32_108 dim 1 : vector<16x128xf32>, i32 -> vector<16x128xf32>
    %cst_109 = arith.constant 0.000000e+00 : f32
    %279 = vector.shape_cast %4 : vector<1x128xi1> to vector<1x128xi1>
    %280 = vector.broadcast %279 : vector<1x128xi1> to vector<16x128xi1>
    %281 = vector.broadcast %cst_109 : f32 to vector<16x128xf32>
    %282 = arith.select %280, %281, %278 : vector<16x128xi1>, vector<16x128xf32>
    %c127_i32_110 = arith.constant 127 : i32
    %283 = tpu.dynamic_rotate %277 by %c127_i32_110 dim 1 : vector<16x128xf32>, i32 -> vector<16x128xf32>
    %cst_111 = arith.constant 0.000000e+00 : f32
    %284 = vector.shape_cast %6 : vector<1x128xi1> to vector<1x128xi1>
    %285 = vector.broadcast %284 : vector<1x128xi1> to vector<16x128xi1>
    %286 = vector.broadcast %cst_111 : f32 to vector<16x128xf32>
    %287 = arith.select %285, %286, %283 : vector<16x128xi1>, vector<16x128xf32>
    %c2_112 = arith.constant 2 : index
    %c0_113 = arith.constant 0 : index
    %c0_114 = arith.constant 0 : index
    %c0_115 = arith.constant 0 : index
    %288 = vector.load %arg6[%c2_112, %c0_113, %c0_114, %c0_115] : memref<4x3x16x16xf32, #tpu.memory_space<vmem>>, vector<1x1x16x16xf32>
    %289 = vector.shape_cast %288 : vector<1x1x16x16xf32> to vector<16x16xf32>
    %cst_116 = arith.constant dense<0.000000e+00> : vector<16x128xf32>
    %290 = tpu.matmul %289, %282, %cst_116 {dimension_numbers = #tpu.dot_dimension_numbers<[1], [0], [0], [1], [0, 0, 1, 1], [], []>} : vector<16x16xf32>, vector<16x128xf32>, vector<16x128xf32> -> vector<16x128xf32>
    %c2_117 = arith.constant 2 : index
    %c1_118 = arith.constant 1 : index
    %c0_119 = arith.constant 0 : index
    %c0_120 = arith.constant 0 : index
    %291 = vector.load %arg6[%c2_117, %c1_118, %c0_119, %c0_120] : memref<4x3x16x16xf32, #tpu.memory_space<vmem>>, vector<1x1x16x16xf32>
    %292 = vector.shape_cast %291 : vector<1x1x16x16xf32> to vector<16x16xf32>
    %cst_121 = arith.constant dense<0.000000e+00> : vector<16x128xf32>
    %293 = tpu.matmul %292, %277, %cst_121 {dimension_numbers = #tpu.dot_dimension_numbers<[1], [0], [0], [1], [0, 0, 1, 1], [], []>} : vector<16x16xf32>, vector<16x128xf32>, vector<16x128xf32> -> vector<16x128xf32>
    %294 = arith.addf %290, %293 : vector<16x128xf32>
    %c2_122 = arith.constant 2 : index
    %c2_123 = arith.constant 2 : index
    %c0_124 = arith.constant 0 : index
    %c0_125 = arith.constant 0 : index
    %295 = vector.load %arg6[%c2_122, %c2_123, %c0_124, %c0_125] : memref<4x3x16x16xf32, #tpu.memory_space<vmem>>, vector<1x1x16x16xf32>
    %296 = vector.shape_cast %295 : vector<1x1x16x16xf32> to vector<16x16xf32>
    %cst_126 = arith.constant dense<0.000000e+00> : vector<16x128xf32>
    %297 = tpu.matmul %296, %287, %cst_126 {dimension_numbers = #tpu.dot_dimension_numbers<[1], [0], [0], [1], [0, 0, 1, 1], [], []>} : vector<16x16xf32>, vector<16x128xf32>, vector<16x128xf32> -> vector<16x128xf32>
    %298 = arith.addf %294, %297 : vector<16x128xf32>
    %c2_127 = arith.constant 2 : index
    %c0_128 = arith.constant 0 : index
    %c0_129 = arith.constant 0 : index
    %299 = vector.load %arg7[%c2_127, %c0_128, %c0_129] : memref<4x16x1xf32, #tpu.memory_space<vmem>>, vector<1x16x1xf32>
    %300 = vector.shape_cast %299 : vector<1x16x1xf32> to vector<16x1xf32>
    %301 = vector.broadcast %300 : vector<16x1xf32> to vector<16x128xf32>
    %302 = arith.addf %298, %301 : vector<16x128xf32>
    %303 = arith.negf %302 : vector<16x128xf32>
    %304 = math.exp %303 : vector<16x128xf32>
    %cst_130 = arith.constant 1.000000e+00 : f32
    %305 = vector.broadcast %cst_130 : f32 to vector<16x128xf32>
    %306 = arith.addf %305, %304 : vector<16x128xf32>
    %307 = arith.divf %305, %306 : vector<16x128xf32>
    %308 = arith.mulf %302, %307 : vector<16x128xf32>
    %c1_i32_131 = arith.constant 1 : i32
    %309 = tpu.dynamic_rotate %308 by %c1_i32_131 dim 1 : vector<16x128xf32>, i32 -> vector<16x128xf32>
    %cst_132 = arith.constant 0.000000e+00 : f32
    %310 = vector.shape_cast %4 : vector<1x128xi1> to vector<1x128xi1>
    %311 = vector.broadcast %310 : vector<1x128xi1> to vector<16x128xi1>
    %312 = vector.broadcast %cst_132 : f32 to vector<16x128xf32>
    %313 = arith.select %311, %312, %309 : vector<16x128xi1>, vector<16x128xf32>
    %c127_i32_133 = arith.constant 127 : i32
    %314 = tpu.dynamic_rotate %308 by %c127_i32_133 dim 1 : vector<16x128xf32>, i32 -> vector<16x128xf32>
    %cst_134 = arith.constant 0.000000e+00 : f32
    %315 = vector.shape_cast %6 : vector<1x128xi1> to vector<1x128xi1>
    %316 = vector.broadcast %315 : vector<1x128xi1> to vector<16x128xi1>
    %317 = vector.broadcast %cst_134 : f32 to vector<16x128xf32>
    %318 = arith.select %316, %317, %314 : vector<16x128xi1>, vector<16x128xf32>
    %c3 = arith.constant 3 : index
    %c0_135 = arith.constant 0 : index
    %c0_136 = arith.constant 0 : index
    %c0_137 = arith.constant 0 : index
    %319 = vector.load %arg6[%c3, %c0_135, %c0_136, %c0_137] : memref<4x3x16x16xf32, #tpu.memory_space<vmem>>, vector<1x1x16x16xf32>
    %320 = vector.shape_cast %319 : vector<1x1x16x16xf32> to vector<16x16xf32>
    %cst_138 = arith.constant dense<0.000000e+00> : vector<16x128xf32>
    %321 = tpu.matmul %320, %313, %cst_138 {dimension_numbers = #tpu.dot_dimension_numbers<[1], [0], [0], [1], [0, 0, 1, 1], [], []>} : vector<16x16xf32>, vector<16x128xf32>, vector<16x128xf32> -> vector<16x128xf32>
    %c3_139 = arith.constant 3 : index
    %c1_140 = arith.constant 1 : index
    %c0_141 = arith.constant 0 : index
    %c0_142 = arith.constant 0 : index
    %322 = vector.load %arg6[%c3_139, %c1_140, %c0_141, %c0_142] : memref<4x3x16x16xf32, #tpu.memory_space<vmem>>, vector<1x1x16x16xf32>
    %323 = vector.shape_cast %322 : vector<1x1x16x16xf32> to vector<16x16xf32>
    %cst_143 = arith.constant dense<0.000000e+00> : vector<16x128xf32>
    %324 = tpu.matmul %323, %308, %cst_143 {dimension_numbers = #tpu.dot_dimension_numbers<[1], [0], [0], [1], [0, 0, 1, 1], [], []>} : vector<16x16xf32>, vector<16x128xf32>, vector<16x128xf32> -> vector<16x128xf32>
    %325 = arith.addf %321, %324 : vector<16x128xf32>
    %c3_144 = arith.constant 3 : index
    %c2_145 = arith.constant 2 : index
    %c0_146 = arith.constant 0 : index
    %c0_147 = arith.constant 0 : index
    %326 = vector.load %arg6[%c3_144, %c2_145, %c0_146, %c0_147] : memref<4x3x16x16xf32, #tpu.memory_space<vmem>>, vector<1x1x16x16xf32>
    %327 = vector.shape_cast %326 : vector<1x1x16x16xf32> to vector<16x16xf32>
    %cst_148 = arith.constant dense<0.000000e+00> : vector<16x128xf32>
    %328 = tpu.matmul %327, %318, %cst_148 {dimension_numbers = #tpu.dot_dimension_numbers<[1], [0], [0], [1], [0, 0, 1, 1], [], []>} : vector<16x16xf32>, vector<16x128xf32>, vector<16x128xf32> -> vector<16x128xf32>
    %329 = arith.addf %325, %328 : vector<16x128xf32>
    %c3_149 = arith.constant 3 : index
    %c0_150 = arith.constant 0 : index
    %c0_151 = arith.constant 0 : index
    %330 = vector.load %arg7[%c3_149, %c0_150, %c0_151] : memref<4x16x1xf32, #tpu.memory_space<vmem>>, vector<1x16x1xf32>
    %331 = vector.shape_cast %330 : vector<1x16x1xf32> to vector<16x1xf32>
    %332 = vector.broadcast %331 : vector<16x1xf32> to vector<16x128xf32>
    %333 = arith.addf %329, %332 : vector<16x128xf32>
    %334 = vector.extract_strided_slice %333 {offsets = [0, 0], sizes = [8, 128], strides = [1, 1]} : vector<16x128xf32> to vector<8x128xf32>
    %335 = arith.subf %204, %334 : vector<8x128xf32>
    %336 = arith.mulf %335, %335 : vector<8x128xf32>
    %cst_152 = arith.constant dense<0.000000e+00> : vector<128xf32>
    %337 = vector.multi_reduction <add>, %336, %cst_152 [0] : vector<8x128xf32> to vector<128xf32>
    %338 = vector.shape_cast %337 : vector<128xf32> to vector<1x128xf32>
    %cst_153 = arith.constant dense<0.000000e+00> : vector<1x8xf32>
    %339 = tpu.matmul %338, %19, %cst_153 {dimension_numbers = #tpu.dot_dimension_numbers<[1], [1], [0], [0], [0, 0, 1, 0], [], []>} : vector<1x128xf32>, vector<8x128xf32>, vector<1x8xf32> -> vector<1x8xf32>
    %cst_154 = arith.constant 7.812500e-03 : f32
    %340 = vector.broadcast %cst_154 : f32 to vector<1x8xf32>
    %341 = arith.mulf %339, %340 : vector<1x8xf32>
    %c0_155 = arith.constant 0 : index
    %c0_156 = arith.constant 0 : index
    %342 = vector.load %arg8[%c0_155, %c0_156] : memref<1x8xf32, #tpu.memory_space<vmem>>, vector<1x8xf32>
    tpu.vector_store %arg8[%c0_155, %c0_156], %341 {strides = array<i32>} : memref<1x8xf32, #tpu.memory_space<vmem>>, vector<1x8xf32>,
    %cst_157 = arith.constant dense<0.000000e+00> : vector<1xf32>
    %343 = vector.multi_reduction <add>, %341, %cst_157 [1] : vector<1x8xf32> to vector<1xf32>
    %344 = vector.shape_cast %343 : vector<1xf32> to vector<1x1xf32>
    %cst_158 = arith.constant 1.250000e-01 : f32
    %345 = vector.broadcast %cst_158 : f32 to vector<1x1xf32>
    %346 = arith.mulf %344, %345 : vector<1x1xf32>
    %c0_159 = arith.constant 0 : index
    %c0_160 = arith.constant 0 : index
    %347 = vector.load %arg9[%c0_159, %c0_160] : memref<1x1xf32, #tpu.memory_space<vmem>>, vector<1x1xf32>
    tpu.vector_store %arg9[%c0_159, %c0_160], %346 {strides = array<i32>} : memref<1x1xf32, #tpu.memory_space<vmem>>, vector<1x1xf32>,
    return
  }
}

</mosaic_0001>

<llo_original>
// kernel: training_network_forward.3
$region0: #{training_network_forward.3}
  #allocation0 [shape = 'u32[]', space=smem, size = 0x4, offset = 0x4, fixed_abs, tag = 'smem constant byte address 0x4 - core index']
  #allocation1 [shape = 'u32[144,128]{1,0:T(1,128)}', space=vmem, size = 0x12000, scoped, tag = 'internal scratch']
  #allocation2 [shape = 'f32[16,128]{1,0:T(8,128)}', space=vmem, size = 0x2000, scoped, tag = 'scratch operand']
  %s0 = inlined_call_operand.vmem [shape: f32[8,8], index: 0, kind: input, shape index: {}]
  %s1 = inlined_call_operand.vmem [shape: f32[8,128], index: 1, kind: input, shape index: {}]
  %s2 = inlined_call_operand.vmem [shape: f32[8,128], index: 2, kind: input, shape index: {}]
  %s3 = inlined_call_operand.vmem [shape: f32[1,8], index: 3, kind: input, shape index: {}]
  %s4 = inlined_call_operand.vmem [shape: f32[24,48], index: 4, kind: input, shape index: {}]
  %s5 = inlined_call_operand.vmem [shape: f32[2,48], index: 5, kind: input, shape index: {}]
  %s6 = inlined_call_operand.vmem [shape: f32[4,3,16,16], index: 6, kind: input, shape index: {}]
  %s7 = inlined_call_operand.vmem [shape: f32[4,16,1], index: 7, kind: input, shape index: {}]
  %s8 = inlined_call_operand.hbm [shape: f32[1,8], index: 8, kind: output, shape index: {0}]
  %s9 = inlined_call_operand.hbm [shape: f32[1,1], index: 9, kind: output, shape index: {1}]
  %10 = xla_tuple %s8, %s9
  %s11 = sld [smem:[#allocation0]]
  $region50: #{training_network_forward.3} parent=0
    _
  %s13 = ssub.s32 1, %s11
  %s14 = scalar_select 0, %s13, %s11
  $region1: #{training_network_forward.3} parent=0
    #allocation3 [shape = 'u8[512]{0}', space=vmem, size = 0x400, scoped, tag = 'output window, operand 0, single buffered']
    #allocation4 [shape = 's32[1]{0}', space=sflag, size = 0x4, scoped, tag = 'scoped memory for training_network_forward.3']
    #allocation5 [shape = 'u8[512]{0}', space=vmem, size = 0x400, scoped, tag = 'output window, operand 1, single buffered']
    #allocation6 [shape = 's32[1]{0}', space=sflag, size = 0x4, scoped, tag = 'scoped memory for training_network_forward.3']
    %15 = vsyncpa [#allocation4], 0
    %16 = vsyncpa [#allocation6], 0
    // Predicated region
    $region2: #{training_network_forward.3} parent=1 // pred_check
      _
    $region3: #{training_network_forward.3} parent=1 // pred_check_branch
      %18 = sbr.rel (0) target = $region5
    $region4: #{training_network_forward.3} parent=1 // pred_region
      _
    $region5: #{training_network_forward.3} parent=1 // pred_fallthru
      _
    // Predicated region
    $region6: #{training_network_forward.3} parent=1 // pred_check
      _
    $region7: #{training_network_forward.3} parent=1 // pred_check_branch
      %20 = sbr.rel (0) target = $region9
    $region8: #{training_network_forward.3} parent=1 // pred_region
      _
    $region9: #{training_network_forward.3} parent=1 // pred_fallthru
      _
    // Predicated region
    $region10: #{training_network_forward.3} parent=1 // pred_check
      _
    $region11: #{training_network_forward.3} parent=1 // pred_check_branch
      %22 = sbr.rel (0) target = $region13
    $region12: #{training_network_forward.3} parent=1 // pred_region
      _
    $region13: #{training_network_forward.3} parent=1 // pred_fallthru
      _
    // Predicated region
    $region14: #{training_network_forward.3} parent=1 // pred_check
      _
    $region15: #{training_network_forward.3} parent=1 // pred_check_branch
      %24 = sbr.rel (0) target = $region17
    $region16: #{training_network_forward.3} parent=1 // pred_region
      _
    $region17: #{training_network_forward.3} parent=1 // pred_fallthru
      _
    // Predicated region
    $region18: #{training_network_forward.3} parent=1 // pred_check
      _
    $region19: #{training_network_forward.3} parent=1 // pred_check_branch
      %26 = sbr.rel (0) target = $region21
    $region20: #{training_network_forward.3} parent=1 // pred_region
      _
    $region21: #{training_network_forward.3} parent=1 // pred_fallthru
      _
    // Predicated region
    $region22: #{training_network_forward.3} parent=1 // pred_check
      _
    $region23: #{training_network_forward.3} parent=1 // pred_check_branch
      %28 = sbr.rel (0) target = $region25
    $region24: #{training_network_forward.3} parent=1 // pred_region
      _
    $region25: #{training_network_forward.3} parent=1 // pred_fallthru
      _
    // Predicated region
    $region26: #{training_network_forward.3} parent=1 // pred_check
      _
    $region27: #{training_network_forward.3} parent=1 // pred_check_branch
      %30 = sbr.rel (0) target = $region29
    $region28: #{training_network_forward.3} parent=1 // pred_region
      _
    $region29: #{training_network_forward.3} parent=1 // pred_fallthru
      _
    // Predicated region
    $region30: #{training_network_forward.3} parent=1 // pred_check
      _
    $region31: #{training_network_forward.3} parent=1 // pred_check_branch
      %32 = sbr.rel (0) target = $region33
    $region32: #{training_network_forward.3} parent=1 // pred_region
      _
    $region33: #{training_network_forward.3} parent=1 // pred_fallthru
      _
    %v33 = vlaneseq
    %v34 = vand.u32 %v33, 127
    %v35 = vand.u32 %v34, 15
    %vm36 = vcmp.eq.s32.totalorder %v35, 0
    %vm37 = vcmp.eq.s32.totalorder %v35, 15
    %v38 = vlaneseq
    %v39 = vshrl.u32 %v38, 7
    %v40 = vmul.u32 %v39, 16
    %vm41 = vcmp.ge.s32.totalorder %v34, %v40
    %v42 = vadd.s32 %v39, 1
    %v43 = vmul.u32 %v42, 16
    %vm44 = vcmp.lt.s32.totalorder %v34, %v43
    %vm45 = vmand %vm41, %vm44
    %v46 = vsel %vm45, 1, 0
    %v47 = vcvt.s32.f32 %v46
    %v48 = vld [vmem:[%s4] sm:$0xff]
    %v49 = vld [vmem:[%s4 + $0x8] sm:$0xff]
    %v50 = vld [vmem:[%s4 + $0x10] sm:$0xff]
    %v51 = vld [vmem:[%s5] sm:$0x1]
    %v52 = vld [vmem:[%s5 + $0x1] sm:$0x1]
    %v53 = vld [vmem:[%s0] sm:$0xff]
    %v54 = vlaneseq
    %v55 = vshrl.u32 %v54, 7
    %v56 = vsub.s32 0, %v55
    %v57 = vrot.slane %v51, %v56
    %vm58 = vcmask 64512
    %v60 = vsel %vm58, %v53, 0
    %62 = vmatprep.subr.mxu0 0.0
    %63 = vmatpush1.msra.mxu0 %v48
    %64 = vmatprep.subr.mxu0 0.0
    %65 = vmatpush1.msra.mxu0 0.0
    %66 = vmatprep.subr.mxu0 0.0
    %67 = vmatpush1.msra.mxu0 0.0
    %68 = vmatprep.subr.mxu0 0.0
    %69 = vmatpush1.msra.mxu0 0.0
    %70 = vmatprep.subr.mxu0 0.0
    %71 = vmatpush1.msra.mxu0 0.0
    %72 = vmatprep.subr.mxu0 0.0
    %73 = vmatpush1.msra.mxu0 0.0
    %74 = vmatprep.subr.mxu0 0.0
    %75 = vmatpush1.msra.mxu0 0.0
    %76 = vmatprep.subr.mxu0 0.0
    %77 = vmatpush1.msra.mxu0 0.0
    %78 = vmatprep.subr.mxu0 0.0
    %79 = vmatpush1.msra.mxu0 0.0
    %80 = vmatprep.subr.mxu0 0.0
    %81 = vmatpush1.msra.mxu0 0.0
    %82 = vmatprep.subr.mxu0 0.0
    %83 = vmatpush1.msra.mxu0 0.0
    %84 = vmatprep.subr.mxu0 0.0
    %85 = vmatpush1.msra.mxu0 0.0
    %86 = vmatprep.subr.mxu0 0.0
    %87 = vmatpush1.msra.mxu0 0.0
    %88 = vmatprep.subr.mxu0 0.0
    %89 = vmatpush1.msra.mxu0 0.0
    %90 = vmatprep.subr.mxu0 0.0
    %91 = vmatpush1.msra.mxu0 0.0
    %92 = vmatprep.subr.mxu0 0.0
    %93 = vmatpush1.msra.mxu0 0.0
    %94 = vmatprep.subr.mxu0 0.0
    %95 = vmatpush1.msra.mxu0 0.0
    %96 = vmatprep.subr.mxu0 0.0
    %97 = vmatpush1.msra.mxu0 0.0
    %98 = vmatprep.subr.mxu0 0.0
    %99 = vmatpush1.msra.mxu0 0.0
    %100 = vmatprep.subr.mxu0 0.0
    %101 = vmatpush1.msra.mxu0 0.0
    %102 = vmatprep.subr.mxu0 0.0
    %103 = vmatpush1.msra.mxu0 0.0
    %104 = vmatprep.subr.mxu0 0.0
    %105 = vmatpush1.msra.mxu0 0.0
    %106 = vmatprep.subr.mxu0 0.0
    %107 = vmatpush1.msra.mxu0 0.0
    %108 = vmatprep.subr.mxu0 0.0
    %109 = vmatpush1.msra.mxu0 0.0
    %110 = vmatprep.subr.mxu0 0.0
    %111 = vmatpush1.msra.mxu0 0.0
    %112 = vmatprep.subr.mxu0 0.0
    %113 = vmatpush1.msra.mxu0 0.0
    %114 = vmatprep.subr.mxu0 0.0
    %115 = vmatpush1.msra.mxu0 0.0
    %116 = vmatprep.subr.mxu0 0.0
    %117 = vmatpush1.msra.mxu0 0.0
    %118 = vmatprep.subr.mxu0 0.0
    %119 = vmatpush1.msra.mxu0 0.0
    %120 = vmatprep.subr.mxu0 0.0
    %121 = vmatpush1.msra.mxu0 0.0
    %122 = vmatprep.subr.mxu0 0.0
    %123 = vmatpush1.msra.mxu0 0.0
    %124 = vmatprep.subr.mxu0 0.0
    %125 = vmatpush1.msra.mxu0 0.0
    %126 = vmatprep.mubr.f32.mxu0 0.0
    %127 = vmatmul.mubr.f32.gmra.mrb[0].mxu0 %v60
    %v128 = vpop.f32.mrb[0].mxu0
    %v129 = vadd.f32 %v57, %v128
    %v130 = vpop.f32.mrb[0].mxu0
    %131 = vdwg.mxu0
    %v132 = vlaneseq
    %v133 = vshrl.u32 %v132, 7
    %v134 = vsub.s32 0, %v133
    %v135 = vrot.slane %v52, %v134
    %vm136 = vcmask 130048
    %v138 = vsel %vm136, 0.0, 0
    %140 = vmatprep.subr.mxu0 0.0
    %141 = vmatpush1.msra.mxu0 %v49
    %142 = vmatprep.subr.mxu0 0.0
    %143 = vmatpush1.msra.mxu0 %v50
    %144 = vmatprep.subr.mxu0 0.0
    %145 = vmatpush1.msra.mxu0 0.0
    %146 = vmatprep.subr.mxu0 0.0
    %147 = vmatpush1.msra.mxu0 0.0
    %148 = vmatprep.subr.mxu0 0.0
    %149 = vmatpush1.msra.mxu0 0.0
    %150 = vmatprep.subr.mxu0 0.0
    %151 = vmatpush1.msra.mxu0 0.0
    %152 = vmatprep.subr.mxu0 0.0
    %153 = vmatpush1.msra.mxu0 0.0
    %154 = vmatprep.subr.mxu0 0.0
    %155 = vmatpush1.msra.mxu0 0.0
    %156 = vmatprep.subr.mxu0 0.0
    %157 = vmatpush1.msra.mxu0 0.0
    %158 = vmatprep.subr.mxu0 0.0
    %159 = vmatpush1.msra.mxu0 0.0
    %160 = vmatprep.subr.mxu0 0.0
    %161 = vmatpush1.msra.mxu0 0.0
    %162 = vmatprep.subr.mxu0 0.0
    %163 = vmatpush1.msra.mxu0 0.0
    %164 = vmatprep.subr.mxu0 0.0
    %165 = vmatpush1.msra.mxu0 0.0
    %166 = vmatprep.subr.mxu0 0.0
    %167 = vmatpush1.msra.mxu0 0.0
    %168 = vmatprep.subr.mxu0 0.0
    %169 = vmatpush1.msra.mxu0 0.0
    %170 = vmatprep.subr.mxu0 0.0
    %171 = vmatpush1.msra.mxu0 0.0
    %172 = vmatprep.subr.mxu0 0.0
    %173 = vmatpush1.msra.mxu0 0.0
    %174 = vmatprep.subr.mxu0 0.0
    %175 = vmatpush1.msra.mxu0 0.0
    %176 = vmatprep.subr.mxu0 0.0
    %177 = vmatpush1.msra.mxu0 0.0
    %178 = vmatprep.subr.mxu0 0.0
    %179 = vmatpush1.msra.mxu0 0.0
    %180 = vmatprep.subr.mxu0 0.0
    %181 = vmatpush1.msra.mxu0 0.0
    %182 = vmatprep.subr.mxu0 0.0
    %183 = vmatpush1.msra.mxu0 0.0
    %184 = vmatprep.subr.mxu0 0.0
    %185 = vmatpush1.msra.mxu0 0.0
    %186 = vmatprep.subr.mxu0 0.0
    %187 = vmatpush1.msra.mxu0 0.0
    %188 = vmatprep.subr.mxu0 0.0
    %189 = vmatpush1.msra.mxu0 0.0
    %190 = vmatprep.subr.mxu0 0.0
    %191 = vmatpush1.msra.mxu0 0.0
    %192 = vmatprep.subr.mxu0 0.0
    %193 = vmatpush1.msra.mxu0 0.0
    %194 = vmatprep.subr.mxu0 0.0
    %195 = vmatpush1.msra.mxu0 0.0
    %196 = vmatprep.subr.mxu0 0.0
    %197 = vmatpush1.msra.mxu0 0.0
    %198 = vmatprep.subr.mxu0 0.0
    %199 = vmatpush1.msra.mxu0 0.0
    %200 = vmatprep.subr.mxu0 0.0
    %201 = vmatpush1.msra.mxu0 0.0
    %202 = vmatprep.subr.mxu0 0.0
    %203 = vmatpush1.msra.mxu0 0.0
    %204 = vmatprep.mubr.f32.mxu0 0.0
    %205 = vmatmul.mubr.f32.gmra.mrb[0].mxu0 %v138
    %v206 = vpop.f32.mrb[0].mxu0
    %v207 = vadd.f32 %v135, %v206
    %v208 = vpop.f32.mrb[0].mxu0
    %209 = vdwg.mxu0
    %v210 = vadd.f32 %v129, %v207
    %v211 = vxor.u32 %v210, 2147483648
    %v212 = vmul.f32 %v211, 1.442695
    %v213 = vpow.pop %v212
    %v214 = vadd.f32 %v213, 1.0
    %v215 = vrcp.pop %v214
    %v216 = vmul.f32 1.0, %v215
    %218 = vrot.lane.b32.xlu0 %v207, 96
    %v219 = vpop.permute.xlu0 %218
    %v221 = vmul.f32 %v216, %v219
    %223 = vrot.lane.b32.xlu0 %v221, 32
    %v224 = vpop.permute.xlu0 %223
    %v226 = vadd.f32 %v129, %v224
    %v227 = vtanh.pop %v226
    %v228 = vsub.f32 1.0, %v216
    %230 = vrot.lane.b32.xlu0 %v227, 112
    %v231 = vpop.permute.xlu0 %230
    %v233 = vmul.f32 %v228, %v231
    %v234 = vmul.f32 %v216, 0.0
    %v235 = vadd.f32 %v233, %v234
    %v236 = vmul.f32 %v235, 0.5
    %238 = vrot.lane.b32.xlu0 %v236, 112
    %v239 = vpop.permute.xlu0 %238
    %vm241 = vcmask 122880
    %242 = vst.msk [vmem:[#allocation2 + $0x8] sm:$0x1] %vm241, %v239
    %243 = vrot.lane.b32.xlu0 %v236, 48
    %v244 = vpop.permute.xlu0 %243
    %vm246 = vcmask 648705
    %247 = vst.msk [vmem:[#allocation2 + $0x7] sm:$0x2] %vm246, %v244
    %249 = vrot.lane.b32.xlu0 %v235, 112
    %v250 = vpop.permute.xlu0 %249
    %v251 = vsel %vm136, %v250, 0
    %253 = vmatprep.subr.mxu0 0.0
    %254 = vmatpush1.msra.mxu0 %v49
    %255 = vmatprep.subr.mxu0 0.0
    %256 = vmatpush1.msra.mxu0 %v50
    %257 = vmatprep.subr.mxu0 0.0
    %258 = vmatpush1.msra.mxu0 0.0
    %259 = vmatprep.subr.mxu0 0.0
    %260 = vmatpush1.msra.mxu0 0.0
    %261 = vmatprep.subr.mxu0 0.0
    %262 = vmatpush1.msra.mxu0 0.0
    %263 = vmatprep.subr.mxu0 0.0
    %264 = vmatpush1.msra.mxu0 0.0
    %265 = vmatprep.subr.mxu0 0.0
    %266 = vmatpush1.msra.mxu0 0.0
    %267 = vmatprep.subr.mxu0 0.0
    %268 = vmatpush1.msra.mxu0 0.0
    %269 = vmatprep.subr.mxu0 0.0
    %270 = vmatpush1.msra.mxu0 0.0
    %271 = vmatprep.subr.mxu0 0.0
    %272 = vmatpush1.msra.mxu0 0.0
    %273 = vmatprep.subr.mxu0 0.0
    %274 = vmatpush1.msra.mxu0 0.0
    %275 = vmatprep.subr.mxu0 0.0
    %276 = vmatpush1.msra.mxu0 0.0
    %277 = vmatprep.subr.mxu0 0.0
    %278 = vmatpush1.msra.mxu0 0.0
    %279 = vmatprep.subr.mxu0 0.0
    %280 = vmatpush1.msra.mxu0 0.0
    %281 = vmatprep.subr.mxu0 0.0
    %282 = vmatpush1.msra.mxu0 0.0
    %283 = vmatprep.subr.mxu0 0.0
    %284 = vmatpush1.msra.mxu0 0.0
    %285 = vmatprep.subr.mxu0 0.0
    %286 = vmatpush1.msra.mxu0 0.0
    %287 = vmatprep.subr.mxu0 0.0
    %288 = vmatpush1.msra.mxu0 0.0
    %289 = vmatprep.subr.mxu0 0.0
    %290 = vmatpush1.msra.mxu0 0.0
    %291 = vmatprep.subr.mxu0 0.0
    %292 = vmatpush1.msra.mxu0 0.0
    %293 = vmatprep.subr.mxu0 0.0
    %294 = vmatpush1.msra.mxu0 0.0
    %295 = vmatprep.subr.mxu0 0.0
    %296 = vmatpush1.msra.mxu0 0.0
    %297 = vmatprep.subr.mxu0 0.0
    %298 = vmatpush1.msra.mxu0 0.0
    %299 = vmatprep.subr.mxu0 0.0
    %300 = vmatpush1.msra.mxu0 0.0
    %301 = vmatprep.subr.mxu0 0.0
    %302 = vmatpush1.msra.mxu0 0.0
    %303 = vmatprep.subr.mxu0 0.0
    %304 = vmatpush1.msra.mxu0 0.0
    %305 = vmatprep.subr.mxu0 0.0
    %306 = vmatpush1.msra.mxu0 0.0
    %307 = vmatprep.subr.mxu0 0.0
    %308 = vmatpush1.msra.mxu0 0.0
    %309 = vmatprep.subr.mxu0 0.0
    %310 = vmatpush1.msra.mxu0 0.0
    %311 = vmatprep.subr.mxu0 0.0
    %312 = vmatpush1.msra.mxu0 0.0
    %313 = vmatprep.subr.mxu0 0.0
    %314 = vmatpush1.msra.mxu0 0.0
    %315 = vmatprep.subr.mxu0 0.0
    %316 = vmatpush1.msra.mxu0 0.0
    %317 = vmatprep.mubr.f32.mxu0 0.0
    %318 = vmatmul.mubr.f32.gmra.mrb[0].mxu0 %v251
    %v319 = vpop.f32.mrb[0].mxu0
    %v320 = vadd.f32 %v135, %v319
    %v321 = vpop.f32.mrb[0].mxu0
    %322 = vdwg.mxu0
    %v324 = vrot.slane %v320, 6
    %v326 = vadd.f32 %v129, %v324
    %v327 = vxor.u32 %v326, 2147483648
    %v328 = vmul.f32 %v327, 1.442695
    %v329 = vpow.pop %v328
    %v330 = vadd.f32 %v329, 1.0
    %v331 = vrcp.pop %v330
    %v332 = vmul.f32 1.0, %v331
    %333 = vrot.lane.b32.xlu0 %v324, 96
    %v334 = vpop.permute.xlu0 %333
    %v336 = vmul.f32 %v332, %v334
    %338 = vrot.lane.b32.xlu0 %v336, 32
    %v339 = vpop.permute.xlu0 %338
    %v341 = vadd.f32 %v129, %v339
    %v342 = vtanh.pop %v341
    %v343 = vsub.f32 1.0, %v332
    %345 = vrot.lane.b32.xlu0 %v342, 112
    %v346 = vpop.permute.xlu0 %345
    %v348 = vmul.f32 %v343, %v346
    %v349 = vrot.slane %v235, 6
    %v351 = vmul.f32 %v332, %v349
    %v352 = vadd.f32 %v348, %v351
    %v353 = vmul.f32 %v352, 0.5
    %vm354 = vcmask 256130
    %355 = vst.msk [vmem:[#allocation2 + $0x6] sm:$0x4] %vm354, %v353
    %357 = vrot.lane.b32.xlu0 %v353, 64
    %v358 = vpop.permute.xlu0 %357
    %vm360 = vcmask 781955
    %361 = vst.msk [vmem:[#allocation2 + $0x5] sm:$0x8] %vm360, %v358
    %v363 = vrot.slane %v352, 2
    %364 = vrot.lane.b32.xlu0 %v363, 112
    %v365 = vpop.permute.xlu0 %364
    %v366 = vsel %vm136, %v365, 0
    %368 = vmatprep.subr.mxu0 0.0
    %369 = vmatpush1.msra.mxu0 %v49
    %370 = vmatprep.subr.mxu0 0.0
    %371 = vmatpush1.msra.mxu0 %v50
    %372 = vmatprep.subr.mxu0 0.0
    %373 = vmatpush1.msra.mxu0 0.0
    %374 = vmatprep.subr.mxu0 0.0
    %375 = vmatpush1.msra.mxu0 0.0
    %376 = vmatprep.subr.mxu0 0.0
    %377 = vmatpush1.msra.mxu0 0.0
    %378 = vmatprep.subr.mxu0 0.0
    %379 = vmatpush1.msra.mxu0 0.0
    %380 = vmatprep.subr.mxu0 0.0
    %381 = vmatpush1.msra.mxu0 0.0
    %382 = vmatprep.subr.mxu0 0.0
    %383 = vmatpush1.msra.mxu0 0.0
    %384 = vmatprep.subr.mxu0 0.0
    %385 = vmatpush1.msra.mxu0 0.0
    %386 = vmatprep.subr.mxu0 0.0
    %387 = vmatpush1.msra.mxu0 0.0
    %388 = vmatprep.subr.mxu0 0.0
    %389 = vmatpush1.msra.mxu0 0.0
    %390 = vmatprep.subr.mxu0 0.0
    %391 = vmatpush1.msra.mxu0 0.0
    %392 = vmatprep.subr.mxu0 0.0
    %393 = vmatpush1.msra.mxu0 0.0
    %394 = vmatprep.subr.mxu0 0.0
    %395 = vmatpush1.msra.mxu0 0.0
    %396 = vmatprep.subr.mxu0 0.0
    %397 = vmatpush1.msra.mxu0 0.0
    %398 = vmatprep.subr.mxu0 0.0
    %399 = vmatpush1.msra.mxu0 0.0
    %400 = vmatprep.subr.mxu0 0.0
    %401 = vmatpush1.msra.mxu0 0.0
    %402 = vmatprep.subr.mxu0 0.0
    %403 = vmatpush1.msra.mxu0 0.0
    %404 = vmatprep.subr.mxu0 0.0
    %405 = vmatpush1.msra.mxu0 0.0
    %406 = vmatprep.subr.mxu0 0.0
    %407 = vmatpush1.msra.mxu0 0.0
    %408 = vmatprep.subr.mxu0 0.0
    %409 = vmatpush1.msra.mxu0 0.0
    %410 = vmatprep.subr.mxu0 0.0
    %411 = vmatpush1.msra.mxu0 0.0
    %412 = vmatprep.subr.mxu0 0.0
    %413 = vmatpush1.msra.mxu0 0.0
    %414 = vmatprep.subr.mxu0 0.0
    %415 = vmatpush1.msra.mxu0 0.0
    %416 = vmatprep.subr.mxu0 0.0
    %417 = vmatpush1.msra.mxu0 0.0
    %418 = vmatprep.subr.mxu0 0.0
    %419 = vmatpush1.msra.mxu0 0.0
    %420 = vmatprep.subr.mxu0 0.0
    %421 = vmatpush1.msra.mxu0 0.0
    %422 = vmatprep.subr.mxu0 0.0
    %423 = vmatpush1.msra.mxu0 0.0
    %424 = vmatprep.subr.mxu0 0.0
    %425 = vmatpush1.msra.mxu0 0.0
    %426 = vmatprep.subr.mxu0 0.0
    %427 = vmatpush1.msra.mxu0 0.0
    %428 = vmatprep.subr.mxu0 0.0
    %429 = vmatpush1.msra.mxu0 0.0
    %430 = vmatprep.subr.mxu0 0.0
    %431 = vmatpush1.msra.mxu0 0.0
    %432 = vmatprep.mubr.f32.mxu0 0.0
    %433 = vmatmul.mubr.f32.gmra.mrb[0].mxu0 %v366
    %v434 = vpop.f32.mrb[0].mxu0
    %v435 = vadd.f32 %v135, %v434
    %v436 = vpop.f32.mrb[0].mxu0
    %437 = vdwg.mxu0
    %v439 = vrot.slane %v435, 4
    %v441 = vadd.f32 %v129, %v439
    %v442 = vxor.u32 %v441, 2147483648
    %v443 = vmul.f32 %v442, 1.442695
    %v444 = vpow.pop %v443
    %v445 = vadd.f32 %v444, 1.0
    %v446 = vrcp.pop %v445
    %v447 = vmul.f32 1.0, %v446
    %448 = vrot.lane.b32.xlu0 %v439, 96
    %v449 = vpop.permute.xlu0 %448
    %v451 = vmul.f32 %v447, %v449
    %453 = vrot.lane.b32.xlu0 %v451, 32
    %v454 = vpop.permute.xlu0 %453
    %v456 = vadd.f32 %v129, %v454
    %v457 = vtanh.pop %v456
    %v458 = vsub.f32 1.0, %v447
    %460 = vrot.lane.b32.xlu0 %v457, 112
    %v461 = vpop.permute.xlu0 %460
    %v463 = vmul.f32 %v458, %v461
    %v464 = vrot.slane %v352, 6
    %v466 = vmul.f32 %v447, %v464
    %v467 = vadd.f32 %v463, %v466
    %v468 = vmul.f32 %v467, 0.5
    %470 = vrot.lane.b32.xlu0 %v468, 16
    %v471 = vpop.permute.xlu0 %470
    %vm473 = vcmask 389380
    %474 = vst.msk [vmem:[#allocation2 + $0x4] sm:$0x10] %vm473, %v471
    %475 = vrot.lane.b32.xlu0 %v468, 80
    %v476 = vpop.permute.xlu0 %475
    %vm478 = vcmask 915205
    %479 = vst.msk [vmem:[#allocation2 + $0x3] sm:$0x20] %vm478, %v476
    %v481 = vrot.slane %v467, 4
    %482 = vrot.lane.b32.xlu0 %v481, 112
    %v483 = vpop.permute.xlu0 %482
    %v484 = vsel %vm136, %v483, 0
    %486 = vmatprep.subr.mxu0 0.0
    %487 = vmatpush1.msra.mxu0 %v49
    %488 = vmatprep.subr.mxu0 0.0
    %489 = vmatpush1.msra.mxu0 %v50
    %490 = vmatprep.subr.mxu0 0.0
    %491 = vmatpush1.msra.mxu0 0.0
    %492 = vmatprep.subr.mxu0 0.0
    %493 = vmatpush1.msra.mxu0 0.0
    %494 = vmatprep.subr.mxu0 0.0
    %495 = vmatpush1.msra.mxu0 0.0
    %496 = vmatprep.subr.mxu0 0.0
    %497 = vmatpush1.msra.mxu0 0.0
    %498 = vmatprep.subr.mxu0 0.0
    %499 = vmatpush1.msra.mxu0 0.0
    %500 = vmatprep.subr.mxu0 0.0
    %501 = vmatpush1.msra.mxu0 0.0
    %502 = vmatprep.subr.mxu0 0.0
    %503 = vmatpush1.msra.mxu0 0.0
    %504 = vmatprep.subr.mxu0 0.0
    %505 = vmatpush1.msra.mxu0 0.0
    %506 = vmatprep.subr.mxu0 0.0
    %507 = vmatpush1.msra.mxu0 0.0
    %508 = vmatprep.subr.mxu0 0.0
    %509 = vmatpush1.msra.mxu0 0.0
    %510 = vmatprep.subr.mxu0 0.0
    %511 = vmatpush1.msra.mxu0 0.0
    %512 = vmatprep.subr.mxu0 0.0
    %513 = vmatpush1.msra.mxu0 0.0
    %514 = vmatprep.subr.mxu0 0.0
    %515 = vmatpush1.msra.mxu0 0.0
    %516 = vmatprep.subr.mxu0 0.0
    %517 = vmatpush1.msra.mxu0 0.0
    %518 = vmatprep.subr.mxu0 0.0
    %519 = vmatpush1.msra.mxu0 0.0
    %520 = vmatprep.subr.mxu0 0.0
    %521 = vmatpush1.msra.mxu0 0.0
    %522 = vmatprep.subr.mxu0 0.0
    %523 = vmatpush1.msra.mxu0 0.0
    %524 = vmatprep.subr.mxu0 0.0
    %525 = vmatpush1.msra.mxu0 0.0
    %526 = vmatprep.subr.mxu0 0.0
    %527 = vmatpush1.msra.mxu0 0.0
    %528 = vmatprep.subr.mxu0 0.0
    %529 = vmatpush1.msra.mxu0 0.0
    %530 = vmatprep.subr.mxu0 0.0
    %531 = vmatpush1.msra.mxu0 0.0
    %532 = vmatprep.subr.mxu0 0.0
    %533 = vmatpush1.msra.mxu0 0.0
    %534 = vmatprep.subr.mxu0 0.0
    %535 = vmatpush1.msra.mxu0 0.0
    %536 = vmatprep.subr.mxu0 0.0
    %537 = vmatpush1.msra.mxu0 0.0
    %538 = vmatprep.subr.mxu0 0.0
    %539 = vmatpush1.msra.mxu0 0.0
    %540 = vmatprep.subr.mxu0 0.0
    %541 = vmatpush1.msra.mxu0 0.0
    %542 = vmatprep.subr.mxu0 0.0
    %543 = vmatpush1.msra.mxu0 0.0
    %544 = vmatprep.subr.mxu0 0.0
    %545 = vmatpush1.msra.mxu0 0.0
    %546 = vmatprep.subr.mxu0 0.0
    %547 = vmatpush1.msra.mxu0 0.0
    %548 = vmatprep.subr.mxu0 0.0
    %549 = vmatpush1.msra.mxu0 0.0
    %550 = vmatprep.mubr.f32.mxu0 0.0
    %551 = vmatmul.mubr.f32.gmra.mrb[0].mxu0 %v484
    %v552 = vpop.f32.mrb[0].mxu0
    %v553 = vadd.f32 %v135, %v552
    %v554 = vpop.f32.mrb[0].mxu0
    %555 = vdwg.mxu0
    %v557 = vrot.slane %v553, 2
    %v559 = vadd.f32 %v129, %v557
    %v560 = vxor.u32 %v559, 2147483648
    %v561 = vmul.f32 %v560, 1.442695
    %v562 = vpow.pop %v561
    %v563 = vadd.f32 %v562, 1.0
    %v564 = vrcp.pop %v563
    %v565 = vmul.f32 1.0, %v564
    %566 = vrot.lane.b32.xlu0 %v557, 96
    %v567 = vpop.permute.xlu0 %566
    %v569 = vmul.f32 %v565, %v567
    %571 = vrot.lane.b32.xlu0 %v569, 32
    %v572 = vpop.permute.xlu0 %571
    %v574 = vadd.f32 %v129, %v572
    %v575 = vtanh.pop %v574
    %v576 = vsub.f32 1.0, %v565
    %578 = vrot.lane.b32.xlu0 %v575, 112
    %v579 = vpop.permute.xlu0 %578
    %v581 = vmul.f32 %v576, %v579
    %v582 = vrot.slane %v467, 6
    %v584 = vmul.f32 %v565, %v582
    %v585 = vadd.f32 %v581, %v584
    %v586 = vmul.f32 %v585, 0.5
    %588 = vrot.lane.b32.xlu0 %v586, 32
    %v589 = vpop.permute.xlu0 %588
    %vm591 = vcmask 522630
    %592 = vst.msk [vmem:[#allocation2 + $0x2] sm:$0x40] %vm591, %v589
    %593 = vrot.lane.b32.xlu0 %v586, 96
    %v594 = vpop.permute.xlu0 %593
    %vm596 = vcmask 1048455
    %597 = vst.msk [vmem:[#allocation2 + $0x1] sm:$0x80] %vm596, %v594
    %v598 = vld [vmem:[%s3] sm:$0x1]
    %v600 = vsel %vm58, %v598, 0
    %602 = vmatprep.subr.mxu0 0.0
    %603 = vmatpush1.msra.mxu0 %v47
    %604 = vmatprep.subr.mxu0 0.0
    %605 = vmatpush1.msra.mxu0 0.0
    %606 = vmatprep.subr.mxu0 0.0
    %607 = vmatpush1.msra.mxu0 0.0
    %608 = vmatprep.subr.mxu0 0.0
    %609 = vmatpush1.msra.mxu0 0.0
    %610 = vmatprep.subr.mxu0 0.0
    %611 = vmatpush1.msra.mxu0 0.0
    %612 = vmatprep.subr.mxu0 0.0
    %613 = vmatpush1.msra.mxu0 0.0
    %614 = vmatprep.subr.mxu0 0.0
    %615 = vmatpush1.msra.mxu0 0.0
    %616 = vmatprep.subr.mxu0 0.0
    %617 = vmatpush1.msra.mxu0 0.0
    %618 = vmatprep.subr.mxu0 0.0
    %619 = vmatpush1.msra.mxu0 0.0
    %620 = vmatprep.subr.mxu0 0.0
    %621 = vmatpush1.msra.mxu0 0.0
    %622 = vmatprep.subr.mxu0 0.0
    %623 = vmatpush1.msra.mxu0 0.0
    %624 = vmatprep.subr.mxu0 0.0
    %625 = vmatpush1.msra.mxu0 0.0
    %626 = vmatprep.subr.mxu0 0.0
    %627 = vmatpush1.msra.mxu0 0.0
    %628 = vmatprep.subr.mxu0 0.0
    %629 = vmatpush1.msra.mxu0 0.0
    %630 = vmatprep.subr.mxu0 0.0
    %631 = vmatpush1.msra.mxu0 0.0
    %632 = vmatprep.subr.mxu0 0.0
    %633 = vmatpush1.msra.mxu0 0.0
    %634 = vmatprep.subr.mxu0 0.0
    %635 = vmatpush1.msra.mxu0 0.0
    %636 = vmatprep.subr.mxu0 0.0
    %637 = vmatpush1.msra.mxu0 0.0
    %638 = vmatprep.subr.mxu0 0.0
    %639 = vmatpush1.msra.mxu0 0.0
    %640 = vmatprep.subr.mxu0 0.0
    %641 = vmatpush1.msra.mxu0 0.0
    %642 = vmatprep.subr.mxu0 0.0
    %643 = vmatpush1.msra.mxu0 0.0
    %644 = vmatprep.subr.mxu0 0.0
    %645 = vmatpush1.msra.mxu0 0.0
    %646 = vmatprep.subr.mxu0 0.0
    %647 = vmatpush1.msra.mxu0 0.0
    %648 = vmatprep.subr.mxu0 0.0
    %649 = vmatpush1.msra.mxu0 0.0
    %650 = vmatprep.subr.mxu0 0.0
    %651 = vmatpush1.msra.mxu0 0.0
    %652 = vmatprep.subr.mxu0 0.0
    %653 = vmatpush1.msra.mxu0 0.0
    %654 = vmatprep.subr.mxu0 0.0
    %655 = vmatpush1.msra.mxu0 0.0
    %656 = vmatprep.subr.mxu0 0.0
    %657 = vmatpush1.msra.mxu0 0.0
    %658 = vmatprep.subr.mxu0 0.0
    %659 = vmatpush1.msra.mxu0 0.0
    %660 = vmatprep.subr.mxu0 0.0
    %661 = vmatpush1.msra.mxu0 0.0
    %662 = vmatprep.subr.mxu0 0.0
    %663 = vmatpush1.msra.mxu0 0.0
    %664 = vmatprep.subr.mxu0 0.0
    %665 = vmatpush1.msra.mxu0 0.0
    %666 = vmatprep.mubr.f32.mxu0 0.0
    %667 = vmatmul.mubr.f32.gmra.mrb[0].mxu0 %v600
    %v668 = vpop.f32.mrb[0].mxu0
    %v669 = vadd.f32 0.0, %v668
    %v670 = vpop.f32.mrb[0].mxu0
    %671 = vdwg.mxu0
    %v672 = vmul.f32 %v669, -0.25
    %v673 = vmul.f32 %v672, %v669
    %v674 = vmul.f32 %v673, 19.9
    %v675 = vmul.f32 %v669, 0.5
    %v676 = vmul.f32 %v675, 0.1
    %v677 = vsub.f32 %v674, %v676
    %v678 = vmul.f32 %v677, 1.442695
    %v679 = vpow.pop %v678
    %v680 = vmul.f32 %v677, 2.0
    %vm681 = vcmp.gt.f32.partialorder %v680, -0.001
    %v682 = vsub.f32 0.0, %v680
    %v683 = vmul.f32 %v680, 0.5
    %v684 = vadd.f32 %v683, 1.0
    %v685 = vmul.f32 %v682, %v684
    %v686 = vmul.f32 %v679, %v679
    %v687 = vsub.f32 1.0, %v686
    %v688 = vsel %vm681, %v685, %v687
    %v689 = vmax.f32 %v688, 0.0
    %v690 = vrsqrt.pop %v689
    %v691 = vmul.f32 %v689, %v690
    %vm692 = vcmp.eq.f32.partialorder %v689, inf
    %v693 = vsel %vm692, %v689, %v691
    %vm694 = vcmp.eq.f32.partialorder %v689, 0.0
    %v695 = vand.u32 %v689, 2147483648
    %v696 = vsel %vm694, %v695, %v693
    %v697 = vld [vmem:[%s2] sm:$0xff]
    %v698 = vld [vmem:[%s1] sm:$0xff]
    %v699 = vlaneseq
    %v700 = vshrl.u32 %v699, 7
    %v701 = vsub.s32 0, %v700
    %v702 = vrot.slane %v679, %v701
    %v703 = vmul.f32 %v702, %v698
    %v704 = vlaneseq
    %v705 = vshrl.u32 %v704, 7
    %v706 = vsub.s32 0, %v705
    %v707 = vrot.slane %v696, %v706
    %v708 = vmul.f32 %v707, %v697
    %v709 = vadd.f32 %v703, %v708
    %710 = vst [vmem:[#allocation2] sm:$0xff] %v709
    %711 = vst [vmem:[#allocation2 + $0x9] sm:$0x1] %v669
    %712 = vst [vmem:[#allocation2 + $0xa] sm:$0x3f] 0.0
    %v713 = vld [vmem:[#allocation2] sm:$0xff]
    %v714 = vld [vmem:[#allocation2 + $0x8] sm:$0xff]
    %715 = vrot.lane.b32.xlu0 %v713, 1
    %v716 = vpop.permute.xlu0 %715
    %717 = vrot.lane.b32.xlu0 %v714, 1
    %v718 = vpop.permute.xlu0 %717
    %v719 = vsel %vm36, 1, 0
    %vm720 = vcmp.eq.s32.totalorder %v719, 1
    %v721 = vsel %vm720, 0.0, %v716
    %v722 = vsel %vm720, 0.0, %v718
    %723 = vrot.lane.b32.xlu0 %v713, 127
    %v724 = vpop.permute.xlu0 %723
    %725 = vrot.lane.b32.xlu0 %v714, 127
    %v726 = vpop.permute.xlu0 %725
    %v727 = vsel %vm37, 1, 0
    %vm728 = vcmp.eq.s32.totalorder %v727, 1
    %v729 = vsel %vm728, 0.0, %v724
    %v730 = vsel %vm728, 0.0, %v726
    %v731 = vld [vmem:[%s6] sm:$0xff]
    %v732 = vld [vmem:[%s6 + $0x8] sm:$0xff]
    %s733 = scalar_lea.vmem %s6, 16
    %v734 = vld [vmem:[%s733] sm:$0xff]
    %v735 = vld [vmem:[%s733 + $0x8] sm:$0xff]
    %v737 = vsel %vm136, %v734, 0
    %v740 = vsel %vm136, %v735, 0
    %742 = vmatprep.subr.mxu0 0.0
    %743 = vmatpush1.msra.mxu0 %v713
    %744 = vmatprep.subr.mxu0 0.0
    %745 = vmatpush1.msra.mxu0 %v714
    %746 = vmatprep.subr.mxu0 0.0
    %747 = vmatpush1.msra.mxu0 0.0
    %748 = vmatprep.subr.mxu0 0.0
    %749 = vmatpush1.msra.mxu0 0.0
    %750 = vmatprep.subr.mxu0 0.0
    %751 = vmatpush1.msra.mxu0 0.0
    %752 = vmatprep.subr.mxu0 0.0
    %753 = vmatpush1.msra.mxu0 0.0
    %754 = vmatprep.subr.mxu0 0.0
    %755 = vmatpush1.msra.mxu0 0.0
    %756 = vmatprep.subr.mxu0 0.0
    %757 = vmatpush1.msra.mxu0 0.0
    %758 = vmatprep.subr.mxu0 0.0
    %759 = vmatpush1.msra.mxu0 0.0
    %760 = vmatprep.subr.mxu0 0.0
    %761 = vmatpush1.msra.mxu0 0.0
    %762 = vmatprep.subr.mxu0 0.0
    %763 = vmatpush1.msra.mxu0 0.0
    %764 = vmatprep.subr.mxu0 0.0
    %765 = vmatpush1.msra.mxu0 0.0
    %766 = vmatprep.subr.mxu0 0.0
    %767 = vmatpush1.msra.mxu0 0.0
    %768 = vmatprep.subr.mxu0 0.0
    %769 = vmatpush1.msra.mxu0 0.0
    %770 = vmatprep.subr.mxu0 0.0
    %771 = vmatpush1.msra.mxu0 0.0
    %772 = vmatprep.subr.mxu0 0.0
    %773 = vmatpush1.msra.mxu0 0.0
    %774 = vmatprep.subr.mxu0 0.0
    %775 = vmatpush1.msra.mxu0 0.0
    %776 = vmatprep.subr.mxu0 0.0
    %777 = vmatpush1.msra.mxu0 0.0
    %778 = vmatprep.subr.mxu0 0.0
    %779 = vmatpush1.msra.mxu0 0.0
    %780 = vmatprep.subr.mxu0 0.0
    %781 = vmatpush1.msra.mxu0 0.0
    %782 = vmatprep.subr.mxu0 0.0
    %783 = vmatpush1.msra.mxu0 0.0
    %784 = vmatprep.subr.mxu0 0.0
    %785 = vmatpush1.msra.mxu0 0.0
    %786 = vmatprep.subr.mxu0 0.0
    %787 = vmatpush1.msra.mxu0 0.0
    %788 = vmatprep.subr.mxu0 0.0
    %789 = vmatpush1.msra.mxu0 0.0
    %790 = vmatprep.subr.mxu0 0.0
    %791 = vmatpush1.msra.mxu0 0.0
    %792 = vmatprep.subr.mxu0 0.0
    %793 = vmatpush1.msra.mxu0 0.0
    %794 = vmatprep.subr.mxu0 0.0
    %795 = vmatpush1.msra.mxu0 0.0
    %796 = vmatprep.subr.mxu0 0.0
    %797 = vmatpush1.msra.mxu0 0.0
    %798 = vmatprep.subr.mxu0 0.0
    %799 = vmatpush1.msra.mxu0 0.0
    %800 = vmatprep.subr.mxu0 0.0
    %801 = vmatpush1.msra.mxu0 0.0
    %802 = vmatprep.subr.mxu0 0.0
    %803 = vmatpush1.msra.mxu0 0.0
    %804 = vmatprep.subr.mxu0 0.0
    %805 = vmatpush1.msra.mxu0 0.0
    %806 = vmatprep.mubr.f32.mxu0 0.0
    %807 = vmatmul.mubr.f32.gmra.mrb[0].mxu0 %v737
    %v808 = vpop.f32.mrb[0].mxu0
    %v809 = vadd.f32 0.0, %v808
    %v810 = vpop.f32.mrb[0].mxu0
    %811 = vmatprep.mubr.f32.mxu0 0.0
    %812 = vmatmul.mubr.f32.gmra.mrb[0].mxu0 %v740
    %v813 = vpop.f32.mrb[0].mxu0
    %v814 = vadd.f32 0.0, %v813
    %v815 = vpop.f32.mrb[0].mxu0
    %816 = vdwg.mxu0
    %v818 = vsel %vm136, %v731, 0
    %v821 = vsel %vm136, %v732, 0
    %823 = vmatprep.subr.mxu0 0.0
    %824 = vmatpush1.msra.mxu0 %v721
    %825 = vmatprep.subr.mxu0 0.0
    %826 = vmatpush1.msra.mxu0 %v722
    %827 = vmatprep.subr.mxu0 0.0
    %828 = vmatpush1.msra.mxu0 0.0
    %829 = vmatprep.subr.mxu0 0.0
    %830 = vmatpush1.msra.mxu0 0.0
    %831 = vmatprep.subr.mxu0 0.0
    %832 = vmatpush1.msra.mxu0 0.0
    %833 = vmatprep.subr.mxu0 0.0
    %834 = vmatpush1.msra.mxu0 0.0
    %835 = vmatprep.subr.mxu0 0.0
    %836 = vmatpush1.msra.mxu0 0.0
    %837 = vmatprep.subr.mxu0 0.0
    %838 = vmatpush1.msra.mxu0 0.0
    %839 = vmatprep.subr.mxu0 0.0
    %840 = vmatpush1.msra.mxu0 0.0
    %841 = vmatprep.subr.mxu0 0.0
    %842 = vmatpush1.msra.mxu0 0.0
    %843 = vmatprep.subr.mxu0 0.0
    %844 = vmatpush1.msra.mxu0 0.0
    %845 = vmatprep.subr.mxu0 0.0
    %846 = vmatpush1.msra.mxu0 0.0
    %847 = vmatprep.subr.mxu0 0.0
    %848 = vmatpush1.msra.mxu0 0.0
    %849 = vmatprep.subr.mxu0 0.0
    %850 = vmatpush1.msra.mxu0 0.0
    %851 = vmatprep.subr.mxu0 0.0
    %852 = vmatpush1.msra.mxu0 0.0
    %853 = vmatprep.subr.mxu0 0.0
    %854 = vmatpush1.msra.mxu0 0.0
    %855 = vmatprep.subr.mxu0 0.0
    %856 = vmatpush1.msra.mxu0 0.0
    %857 = vmatprep.subr.mxu0 0.0
    %858 = vmatpush1.msra.mxu0 0.0
    %859 = vmatprep.subr.mxu0 0.0
    %860 = vmatpush1.msra.mxu0 0.0
    %861 = vmatprep.subr.mxu0 0.0
    %862 = vmatpush1.msra.mxu0 0.0
    %863 = vmatprep.subr.mxu0 0.0
    %864 = vmatpush1.msra.mxu0 0.0
    %865 = vmatprep.subr.mxu0 0.0
    %866 = vmatpush1.msra.mxu0 0.0
    %867 = vmatprep.subr.mxu0 0.0
    %868 = vmatpush1.msra.mxu0 0.0
    %869 = vmatprep.subr.mxu0 0.0
    %870 = vmatpush1.msra.mxu0 0.0
    %871 = vmatprep.subr.mxu0 0.0
    %872 = vmatpush1.msra.mxu0 0.0
    %873 = vmatprep.subr.mxu0 0.0
    %874 = vmatpush1.msra.mxu0 0.0
    %875 = vmatprep.subr.mxu0 0.0
    %876 = vmatpush1.msra.mxu0 0.0
    %877 = vmatprep.subr.mxu0 0.0
    %878 = vmatpush1.msra.mxu0 0.0
    %879 = vmatprep.subr.mxu0 0.0
    %880 = vmatpush1.msra.mxu0 0.0
    %881 = vmatprep.subr.mxu0 0.0
    %882 = vmatpush1.msra.mxu0 0.0
    %883 = vmatprep.subr.mxu0 0.0
    %884 = vmatpush1.msra.mxu0 0.0
    %885 = vmatprep.subr.mxu0 0.0
    %886 = vmatpush1.msra.mxu0 0.0
    %887 = vmatprep.mubr.f32.mxu0 0.0
    %888 = vmatmul.mubr.f32.gmra.mrb[0].mxu0 %v818
    %v889 = vpop.f32.mrb[0].mxu0
    %v890 = vadd.f32 %v809, %v889
    %v891 = vpop.f32.mrb[0].mxu0
    %892 = vmatprep.mubr.f32.mxu0 0.0
    %893 = vmatmul.mubr.f32.gmra.mrb[0].mxu0 %v821
    %v894 = vpop.f32.mrb[0].mxu0
    %v895 = vadd.f32 %v814, %v894
    %v896 = vpop.f32.mrb[0].mxu0
    %897 = vdwg.mxu0
    %s898 = scalar_lea.vmem %s6, 32
    %v899 = vld [vmem:[%s898] sm:$0xff]
    %v900 = vld [vmem:[%s898 + $0x8] sm:$0xff]
    %v902 = vsel %vm136, %v899, 0
    %v905 = vsel %vm136, %v900, 0
    %907 = vmatprep.subr.mxu0 0.0
    %908 = vmatpush1.msra.mxu0 %v729
    %909 = vmatprep.subr.mxu0 0.0
    %910 = vmatpush1.msra.mxu0 %v730
    %911 = vmatprep.subr.mxu0 0.0
    %912 = vmatpush1.msra.mxu0 0.0
    %913 = vmatprep.subr.mxu0 0.0
    %914 = vmatpush1.msra.mxu0 0.0
    %915 = vmatprep.subr.mxu0 0.0
    %916 = vmatpush1.msra.mxu0 0.0
    %917 = vmatprep.subr.mxu0 0.0
    %918 = vmatpush1.msra.mxu0 0.0
    %919 = vmatprep.subr.mxu0 0.0
    %920 = vmatpush1.msra.mxu0 0.0
    %921 = vmatprep.subr.mxu0 0.0
    %922 = vmatpush1.msra.mxu0 0.0
    %923 = vmatprep.subr.mxu0 0.0
    %924 = vmatpush1.msra.mxu0 0.0
    %925 = vmatprep.subr.mxu0 0.0
    %926 = vmatpush1.msra.mxu0 0.0
    %927 = vmatprep.subr.mxu0 0.0
    %928 = vmatpush1.msra.mxu0 0.0
    %929 = vmatprep.subr.mxu0 0.0
    %930 = vmatpush1.msra.mxu0 0.0
    %931 = vmatprep.subr.mxu0 0.0
    %932 = vmatpush1.msra.mxu0 0.0
    %933 = vmatprep.subr.mxu0 0.0
    %934 = vmatpush1.msra.mxu0 0.0
    %935 = vmatprep.subr.mxu0 0.0
    %936 = vmatpush1.msra.mxu0 0.0
    %937 = vmatprep.subr.mxu0 0.0
    %938 = vmatpush1.msra.mxu0 0.0
    %939 = vmatprep.subr.mxu0 0.0
    %940 = vmatpush1.msra.mxu0 0.0
    %941 = vmatprep.subr.mxu0 0.0
    %942 = vmatpush1.msra.mxu0 0.0
    %943 = vmatprep.subr.mxu0 0.0
    %944 = vmatpush1.msra.mxu0 0.0
    %945 = vmatprep.subr.mxu0 0.0
    %946 = vmatpush1.msra.mxu0 0.0
    %947 = vmatprep.subr.mxu0 0.0
    %948 = vmatpush1.msra.mxu0 0.0
    %949 = vmatprep.subr.mxu0 0.0
    %950 = vmatpush1.msra.mxu0 0.0
    %951 = vmatprep.subr.mxu0 0.0
    %952 = vmatpush1.msra.mxu0 0.0
    %953 = vmatprep.subr.mxu0 0.0
    %954 = vmatpush1.msra.mxu0 0.0
    %955 = vmatprep.subr.mxu0 0.0
    %956 = vmatpush1.msra.mxu0 0.0
    %957 = vmatprep.subr.mxu0 0.0
    %958 = vmatpush1.msra.mxu0 0.0
    %959 = vmatprep.subr.mxu0 0.0
    %960 = vmatpush1.msra.mxu0 0.0
    %961 = vmatprep.subr.mxu0 0.0
    %962 = vmatpush1.msra.mxu0 0.0
    %963 = vmatprep.subr.mxu0 0.0
    %964 = vmatpush1.msra.mxu0 0.0
    %965 = vmatprep.subr.mxu0 0.0
    %966 = vmatpush1.msra.mxu0 0.0
    %967 = vmatprep.subr.mxu0 0.0
    %968 = vmatpush1.msra.mxu0 0.0
    %969 = vmatprep.subr.mxu0 0.0
    %970 = vmatpush1.msra.mxu0 0.0
    %971 = vmatprep.mubr.f32.mxu0 0.0
    %972 = vmatmul.mubr.f32.gmra.mrb[0].mxu0 %v902
    %v973 = vpop.f32.mrb[0].mxu0
    %v974 = vadd.f32 0.0, %v973
    %v975 = vpop.f32.mrb[0].mxu0
    %976 = vmatprep.mubr.f32.mxu0 0.0
    %977 = vmatmul.mubr.f32.gmra.mrb[0].mxu0 %v905
    %v978 = vpop.f32.mrb[0].mxu0
    %v979 = vadd.f32 0.0, %v978
    %v980 = vpop.f32.mrb[0].mxu0
    %981 = vdwg.mxu0
    %v982 = vadd.f32 %v890, %v974
    %v983 = vadd.f32 %v895, %v979
    %v984 = vld [vmem:[%s7] sm:$0xff]
    %v985 = vld [vmem:[%s7 + $0x8] sm:$0xff]
    %987 = vset.pattern.permute.xlu0 0
    %988 = vperm.xlu0 %987, %v984
    %v989 = vpop.permute.xlu0 %988
    %992 = vset.pattern.permute.xlu0 0
    %993 = vperm.xlu0 %992, %v985
    %v994 = vpop.permute.xlu0 %993
    %v996 = vadd.f32 %v982, %v989
    %v997 = vadd.f32 %v983, %v994
    %v998 = vxor.u32 %v996, 2147483648
    %v999 = vxor.u32 %v997, 2147483648
    %v1000 = vmul.f32 %v998, 1.442695
    %v1001 = vpow.pop %v1000
    %v1002 = vmul.f32 %v999, 1.442695
    %v1003 = vpow.pop %v1002
    %v1004 = vadd.f32 %v1001, 1.0
    %v1005 = vadd.f32 %v1003, 1.0
    %v1006 = vrcp.pop %v1004
    %v1007 = vmul.f32 1.0, %v1006
    %v1008 = vrcp.pop %v1005
    %v1009 = vmul.f32 1.0, %v1008
    %v1010 = vmul.f32 %v996, %v1007
    %v1011 = vmul.f32 %v997, %v1009
    %1012 = vrot.lane.b32.xlu0 %v1010, 1
    %v1013 = vpop.permute.xlu0 %1012
    %1014 = vrot.lane.b32.xlu0 %v1011, 1
    %v1015 = vpop.permute.xlu0 %1014
    %v1016 = vsel %vm720, 0.0, %v1013
    %v1017 = vsel %vm720, 0.0, %v1015
    %1018 = vrot.lane.b32.xlu0 %v1010, 127
    %v1019 = vpop.permute.xlu0 %1018
    %1020 = vrot.lane.b32.xlu0 %v1011, 127
    %v1021 = vpop.permute.xlu0 %1020
    %v1022 = vsel %vm728, 0.0, %v1019
    %v1023 = vsel %vm728, 0.0, %v1021
    %s1024 = scalar_lea.vmem %s6, 48
    %v1025 = vld [vmem:[%s1024] sm:$0xff]
    %v1026 = vld [vmem:[%s1024 + $0x8] sm:$0xff]
    %s1027 = scalar_lea.vmem %s6, 64
    %v1028 = vld [vmem:[%s1027] sm:$0xff]
    %v1029 = vld [vmem:[%s1027 + $0x8] sm:$0xff]
    %v1031 = vsel %vm136, %v1028, 0
    %v1034 = vsel %vm136, %v1029, 0
    %1036 = vmatprep.subr.mxu0 0.0
    %1037 = vmatpush1.msra.mxu0 %v1010
    %1038 = vmatprep.subr.mxu0 0.0
    %1039 = vmatpush1.msra.mxu0 %v1011
    %1040 = vmatprep.subr.mxu0 0.0
    %1041 = vmatpush1.msra.mxu0 0.0
    %1042 = vmatprep.subr.mxu0 0.0
    %1043 = vmatpush1.msra.mxu0 0.0
    %1044 = vmatprep.subr.mxu0 0.0
    %1045 = vmatpush1.msra.mxu0 0.0
    %1046 = vmatprep.subr.mxu0 0.0
    %1047 = vmatpush1.msra.mxu0 0.0
    %1048 = vmatprep.subr.mxu0 0.0
    %1049 = vmatpush1.msra.mxu0 0.0
    %1050 = vmatprep.subr.mxu0 0.0
    %1051 = vmatpush1.msra.mxu0 0.0
    %1052 = vmatprep.subr.mxu0 0.0
    %1053 = vmatpush1.msra.mxu0 0.0
    %1054 = vmatprep.subr.mxu0 0.0
    %1055 = vmatpush1.msra.mxu0 0.0
    %1056 = vmatprep.subr.mxu0 0.0
    %1057 = vmatpush1.msra.mxu0 0.0
    %1058 = vmatprep.subr.mxu0 0.0
    %1059 = vmatpush1.msra.mxu0 0.0
    %1060 = vmatprep.subr.mxu0 0.0
    %1061 = vmatpush1.msra.mxu0 0.0
    %1062 = vmatprep.subr.mxu0 0.0
    %1063 = vmatpush1.msra.mxu0 0.0
    %1064 = vmatprep.subr.mxu0 0.0
    %1065 = vmatpush1.msra.mxu0 0.0
    %1066 = vmatprep.subr.mxu0 0.0
    %1067 = vmatpush1.msra.mxu0 0.0
    %1068 = vmatprep.subr.mxu0 0.0
    %1069 = vmatpush1.msra.mxu0 0.0
    %1070 = vmatprep.subr.mxu0 0.0
    %1071 = vmatpush1.msra.mxu0 0.0
    %1072 = vmatprep.subr.mxu0 0.0
    %1073 = vmatpush1.msra.mxu0 0.0
    %1074 = vmatprep.subr.mxu0 0.0
    %1075 = vmatpush1.msra.mxu0 0.0
    %1076 = vmatprep.subr.mxu0 0.0
    %1077 = vmatpush1.msra.mxu0 0.0
    %1078 = vmatprep.subr.mxu0 0.0
    %1079 = vmatpush1.msra.mxu0 0.0
    %1080 = vmatprep.subr.mxu0 0.0
    %1081 = vmatpush1.msra.mxu0 0.0
    %1082 = vmatprep.subr.mxu0 0.0
    %1083 = vmatpush1.msra.mxu0 0.0
    %1084 = vmatprep.subr.mxu0 0.0
    %1085 = vmatpush1.msra.mxu0 0.0
    %1086 = vmatprep.subr.mxu0 0.0
    %1087 = vmatpush1.msra.mxu0 0.0
    %1088 = vmatprep.subr.mxu0 0.0
    %1089 = vmatpush1.msra.mxu0 0.0
    %1090 = vmatprep.subr.mxu0 0.0
    %1091 = vmatpush1.msra.mxu0 0.0
    %1092 = vmatprep.subr.mxu0 0.0
    %1093 = vmatpush1.msra.mxu0 0.0
    %1094 = vmatprep.subr.mxu0 0.0
    %1095 = vmatpush1.msra.mxu0 0.0
    %1096 = vmatprep.subr.mxu0 0.0
    %1097 = vmatpush1.msra.mxu0 0.0
    %1098 = vmatprep.subr.mxu0 0.0
    %1099 = vmatpush1.msra.mxu0 0.0
    %1100 = vmatprep.mubr.f32.mxu0 0.0
    %1101 = vmatmul.mubr.f32.gmra.mrb[0].mxu0 %v1031
    %v1102 = vpop.f32.mrb[0].mxu0
    %v1103 = vadd.f32 0.0, %v1102
    %v1104 = vpop.f32.mrb[0].mxu0
    %1105 = vmatprep.mubr.f32.mxu0 0.0
    %1106 = vmatmul.mubr.f32.gmra.mrb[0].mxu0 %v1034
    %v1107 = vpop.f32.mrb[0].mxu0
    %v1108 = vadd.f32 0.0, %v1107
    %v1109 = vpop.f32.mrb[0].mxu0
    %1110 = vdwg.mxu0
    %v1112 = vsel %vm136, %v1025, 0
    %v1115 = vsel %vm136, %v1026, 0
    %1117 = vmatprep.subr.mxu0 0.0
    %1118 = vmatpush1.msra.mxu0 %v1016
    %1119 = vmatprep.subr.mxu0 0.0
    %1120 = vmatpush1.msra.mxu0 %v1017
    %1121 = vmatprep.subr.mxu0 0.0
    %1122 = vmatpush1.msra.mxu0 0.0
    %1123 = vmatprep.subr.mxu0 0.0
    %1124 = vmatpush1.msra.mxu0 0.0
    %1125 = vmatprep.subr.mxu0 0.0
    %1126 = vmatpush1.msra.mxu0 0.0
    %1127 = vmatprep.subr.mxu0 0.0
    %1128 = vmatpush1.msra.mxu0 0.0
    %1129 = vmatprep.subr.mxu0 0.0
    %1130 = vmatpush1.msra.mxu0 0.0
    %1131 = vmatprep.subr.mxu0 0.0
    %1132 = vmatpush1.msra.mxu0 0.0
    %1133 = vmatprep.subr.mxu0 0.0
    %1134 = vmatpush1.msra.mxu0 0.0
    %1135 = vmatprep.subr.mxu0 0.0
    %1136 = vmatpush1.msra.mxu0 0.0
    %1137 = vmatprep.subr.mxu0 0.0
    %1138 = vmatpush1.msra.mxu0 0.0
    %1139 = vmatprep.subr.mxu0 0.0
    %1140 = vmatpush1.msra.mxu0 0.0
    %1141 = vmatprep.subr.mxu0 0.0
    %1142 = vmatpush1.msra.mxu0 0.0
    %1143 = vmatprep.subr.mxu0 0.0
    %1144 = vmatpush1.msra.mxu0 0.0
    %1145 = vmatprep.subr.mxu0 0.0
    %1146 = vmatpush1.msra.mxu0 0.0
    %1147 = vmatprep.subr.mxu0 0.0
    %1148 = vmatpush1.msra.mxu0 0.0
    %1149 = vmatprep.subr.mxu0 0.0
    %1150 = vmatpush1.msra.mxu0 0.0
    %1151 = vmatprep.subr.mxu0 0.0
    %1152 = vmatpush1.msra.mxu0 0.0
    %1153 = vmatprep.subr.mxu0 0.0
    %1154 = vmatpush1.msra.mxu0 0.0
    %1155 = vmatprep.subr.mxu0 0.0
    %1156 = vmatpush1.msra.mxu0 0.0
    %1157 = vmatprep.subr.mxu0 0.0
    %1158 = vmatpush1.msra.mxu0 0.0
    %1159 = vmatprep.subr.mxu0 0.0
    %1160 = vmatpush1.msra.mxu0 0.0
    %1161 = vmatprep.subr.mxu0 0.0
    %1162 = vmatpush1.msra.mxu0 0.0
    %1163 = vmatprep.subr.mxu0 0.0
    %1164 = vmatpush1.msra.mxu0 0.0
    %1165 = vmatprep.subr.mxu0 0.0
    %1166 = vmatpush1.msra.mxu0 0.0
    %1167 = vmatprep.subr.mxu0 0.0
    %1168 = vmatpush1.msra.mxu0 0.0
    %1169 = vmatprep.subr.mxu0 0.0
    %1170 = vmatpush1.msra.mxu0 0.0
    %1171 = vmatprep.subr.mxu0 0.0
    %1172 = vmatpush1.msra.mxu0 0.0
    %1173 = vmatprep.subr.mxu0 0.0
    %1174 = vmatpush1.msra.mxu0 0.0
    %1175 = vmatprep.subr.mxu0 0.0
    %1176 = vmatpush1.msra.mxu0 0.0
    %1177 = vmatprep.subr.mxu0 0.0
    %1178 = vmatpush1.msra.mxu0 0.0
    %1179 = vmatprep.subr.mxu0 0.0
    %1180 = vmatpush1.msra.mxu0 0.0
    %1181 = vmatprep.mubr.f32.mxu0 0.0
    %1182 = vmatmul.mubr.f32.gmra.mrb[0].mxu0 %v1112
    %v1183 = vpop.f32.mrb[0].mxu0
    %v1184 = vadd.f32 %v1103, %v1183
    %v1185 = vpop.f32.mrb[0].mxu0
    %1186 = vmatprep.mubr.f32.mxu0 0.0
    %1187 = vmatmul.mubr.f32.gmra.mrb[0].mxu0 %v1115
    %v1188 = vpop.f32.mrb[0].mxu0
    %v1189 = vadd.f32 %v1108, %v1188
    %v1190 = vpop.f32.mrb[0].mxu0
    %1191 = vdwg.mxu0
    %s1192 = scalar_lea.vmem %s6, 80
    %v1193 = vld [vmem:[%s1192] sm:$0xff]
    %v1194 = vld [vmem:[%s1192 + $0x8] sm:$0xff]
    %v1196 = vsel %vm136, %v1193, 0
    %v1199 = vsel %vm136, %v1194, 0
    %1201 = vmatprep.subr.mxu0 0.0
    %1202 = vmatpush1.msra.mxu0 %v1022
    %1203 = vmatprep.subr.mxu0 0.0
    %1204 = vmatpush1.msra.mxu0 %v1023
    %1205 = vmatprep.subr.mxu0 0.0
    %1206 = vmatpush1.msra.mxu0 0.0
    %1207 = vmatprep.subr.mxu0 0.0
    %1208 = vmatpush1.msra.mxu0 0.0
    %1209 = vmatprep.subr.mxu0 0.0
    %1210 = vmatpush1.msra.mxu0 0.0
    %1211 = vmatprep.subr.mxu0 0.0
    %1212 = vmatpush1.msra.mxu0 0.0
    %1213 = vmatprep.subr.mxu0 0.0
    %1214 = vmatpush1.msra.mxu0 0.0
    %1215 = vmatprep.subr.mxu0 0.0
    %1216 = vmatpush1.msra.mxu0 0.0
    %1217 = vmatprep.subr.mxu0 0.0
    %1218 = vmatpush1.msra.mxu0 0.0
    %1219 = vmatprep.subr.mxu0 0.0
    %1220 = vmatpush1.msra.mxu0 0.0
    %1221 = vmatprep.subr.mxu0 0.0
    %1222 = vmatpush1.msra.mxu0 0.0
    %1223 = vmatprep.subr.mxu0 0.0
    %1224 = vmatpush1.msra.mxu0 0.0
    %1225 = vmatprep.subr.mxu0 0.0
    %1226 = vmatpush1.msra.mxu0 0.0
    %1227 = vmatprep.subr.mxu0 0.0
    %1228 = vmatpush1.msra.mxu0 0.0
    %1229 = vmatprep.subr.mxu0 0.0
    %1230 = vmatpush1.msra.mxu0 0.0
    %1231 = vmatprep.subr.mxu0 0.0
    %1232 = vmatpush1.msra.mxu0 0.0
    %1233 = vmatprep.subr.mxu0 0.0
    %1234 = vmatpush1.msra.mxu0 0.0
    %1235 = vmatprep.subr.mxu0 0.0
    %1236 = vmatpush1.msra.mxu0 0.0
    %1237 = vmatprep.subr.mxu0 0.0
    %1238 = vmatpush1.msra.mxu0 0.0
    %1239 = vmatprep.subr.mxu0 0.0
    %1240 = vmatpush1.msra.mxu0 0.0
    %1241 = vmatprep.subr.mxu0 0.0
    %1242 = vmatpush1.msra.mxu0 0.0
    %1243 = vmatprep.subr.mxu0 0.0
    %1244 = vmatpush1.msra.mxu0 0.0
    %1245 = vmatprep.subr.mxu0 0.0
    %1246 = vmatpush1.msra.mxu0 0.0
    %1247 = vmatprep.subr.mxu0 0.0
    %1248 = vmatpush1.msra.mxu0 0.0
    %1249 = vmatprep.subr.mxu0 0.0
    %1250 = vmatpush1.msra.mxu0 0.0
    %1251 = vmatprep.subr.mxu0 0.0
    %1252 = vmatpush1.msra.mxu0 0.0
    %1253 = vmatprep.subr.mxu0 0.0
    %1254 = vmatpush1.msra.mxu0 0.0
    %1255 = vmatprep.subr.mxu0 0.0
    %1256 = vmatpush1.msra.mxu0 0.0
    %1257 = vmatprep.subr.mxu0 0.0
    %1258 = vmatpush1.msra.mxu0 0.0
    %1259 = vmatprep.subr.mxu0 0.0
    %1260 = vmatpush1.msra.mxu0 0.0
    %1261 = vmatprep.subr.mxu0 0.0
    %1262 = vmatpush1.msra.mxu0 0.0
    %1263 = vmatprep.subr.mxu0 0.0
    %1264 = vmatpush1.msra.mxu0 0.0
    %1265 = vmatprep.mubr.f32.mxu0 0.0
    %1266 = vmatmul.mubr.f32.gmra.mrb[0].mxu0 %v1196
    %v1267 = vpop.f32.mrb[0].mxu0
    %v1268 = vadd.f32 0.0, %v1267
    %v1269 = vpop.f32.mrb[0].mxu0
    %1270 = vmatprep.mubr.f32.mxu0 0.0
    %1271 = vmatmul.mubr.f32.gmra.mrb[0].mxu0 %v1199
    %v1272 = vpop.f32.mrb[0].mxu0
    %v1273 = vadd.f32 0.0, %v1272
    %v1274 = vpop.f32.mrb[0].mxu0
    %1275 = vdwg.mxu0
    %v1276 = vadd.f32 %v1184, %v1268
    %v1277 = vadd.f32 %v1189, %v1273
    %s1278 = scalar_lea.vmem %s7, 16
    %v1279 = vld [vmem:[%s1278] sm:$0xff]
    %v1280 = vld [vmem:[%s1278 + $0x8] sm:$0xff]
    %1282 = vset.pattern.permute.xlu0 0
    %1283 = vperm.xlu0 %1282, %v1279
    %v1284 = vpop.permute.xlu0 %1283
    %1287 = vset.pattern.permute.xlu0 0
    %1288 = vperm.xlu0 %1287, %v1280
    %v1289 = vpop.permute.xlu0 %1288
    %v1291 = vadd.f32 %v1276, %v1284
    %v1292 = vadd.f32 %v1277, %v1289
    %v1293 = vxor.u32 %v1291, 2147483648
    %v1294 = vxor.u32 %v1292, 2147483648
    %v1295 = vmul.f32 %v1293, 1.442695
    %v1296 = vpow.pop %v1295
    %v1297 = vmul.f32 %v1294, 1.442695
    %v1298 = vpow.pop %v1297
    %v1299 = vadd.f32 %v1296, 1.0
    %v1300 = vadd.f32 %v1298, 1.0
    %v1301 = vrcp.pop %v1299
    %v1302 = vmul.f32 1.0, %v1301
    %v1303 = vrcp.pop %v1300
    %v1304 = vmul.f32 1.0, %v1303
    %v1305 = vmul.f32 %v1291, %v1302
    %v1306 = vmul.f32 %v1292, %v1304
    %1307 = vrot.lane.b32.xlu0 %v1305, 1
    %v1308 = vpop.permute.xlu0 %1307
    %1309 = vrot.lane.b32.xlu0 %v1306, 1
    %v1310 = vpop.permute.xlu0 %1309
    %v1311 = vsel %vm720, 0.0, %v1308
    %v1312 = vsel %vm720, 0.0, %v1310
    %1313 = vrot.lane.b32.xlu0 %v1305, 127
    %v1314 = vpop.permute.xlu0 %1313
    %1315 = vrot.lane.b32.xlu0 %v1306, 127
    %v1316 = vpop.permute.xlu0 %1315
    %v1317 = vsel %vm728, 0.0, %v1314
    %v1318 = vsel %vm728, 0.0, %v1316
    %s1319 = scalar_lea.vmem %s6, 96
    %v1320 = vld [vmem:[%s1319] sm:$0xff]
    %v1321 = vld [vmem:[%s1319 + $0x8] sm:$0xff]
    %s1322 = scalar_lea.vmem %s6, 112
    %v1323 = vld [vmem:[%s1322] sm:$0xff]
    %v1324 = vld [vmem:[%s1322 + $0x8] sm:$0xff]
    %v1326 = vsel %vm136, %v1323, 0
    %v1329 = vsel %vm136, %v1324, 0
    %1331 = vmatprep.subr.mxu0 0.0
    %1332 = vmatpush1.msra.mxu0 %v1305
    %1333 = vmatprep.subr.mxu0 0.0
    %1334 = vmatpush1.msra.mxu0 %v1306
    %1335 = vmatprep.subr.mxu0 0.0
    %1336 = vmatpush1.msra.mxu0 0.0
    %1337 = vmatprep.subr.mxu0 0.0
    %1338 = vmatpush1.msra.mxu0 0.0
    %1339 = vmatprep.subr.mxu0 0.0
    %1340 = vmatpush1.msra.mxu0 0.0
    %1341 = vmatprep.subr.mxu0 0.0
    %1342 = vmatpush1.msra.mxu0 0.0
    %1343 = vmatprep.subr.mxu0 0.0
    %1344 = vmatpush1.msra.mxu0 0.0
    %1345 = vmatprep.subr.mxu0 0.0
    %1346 = vmatpush1.msra.mxu0 0.0
    %1347 = vmatprep.subr.mxu0 0.0
    %1348 = vmatpush1.msra.mxu0 0.0
    %1349 = vmatprep.subr.mxu0 0.0
    %1350 = vmatpush1.msra.mxu0 0.0
    %1351 = vmatprep.subr.mxu0 0.0
    %1352 = vmatpush1.msra.mxu0 0.0
    %1353 = vmatprep.subr.mxu0 0.0
    %1354 = vmatpush1.msra.mxu0 0.0
    %1355 = vmatprep.subr.mxu0 0.0
    %1356 = vmatpush1.msra.mxu0 0.0
    %1357 = vmatprep.subr.mxu0 0.0
    %1358 = vmatpush1.msra.mxu0 0.0
    %1359 = vmatprep.subr.mxu0 0.0
    %1360 = vmatpush1.msra.mxu0 0.0
    %1361 = vmatprep.subr.mxu0 0.0
    %1362 = vmatpush1.msra.mxu0 0.0
    %1363 = vmatprep.subr.mxu0 0.0
    %1364 = vmatpush1.msra.mxu0 0.0
    %1365 = vmatprep.subr.mxu0 0.0
    %1366 = vmatpush1.msra.mxu0 0.0
    %1367 = vmatprep.subr.mxu0 0.0
    %1368 = vmatpush1.msra.mxu0 0.0
    %1369 = vmatprep.subr.mxu0 0.0
    %1370 = vmatpush1.msra.mxu0 0.0
    %1371 = vmatprep.subr.mxu0 0.0
    %1372 = vmatpush1.msra.mxu0 0.0
    %1373 = vmatprep.subr.mxu0 0.0
    %1374 = vmatpush1.msra.mxu0 0.0
    %1375 = vmatprep.subr.mxu0 0.0
    %1376 = vmatpush1.msra.mxu0 0.0
    %1377 = vmatprep.subr.mxu0 0.0
    %1378 = vmatpush1.msra.mxu0 0.0
    %1379 = vmatprep.subr.mxu0 0.0
    %1380 = vmatpush1.msra.mxu0 0.0
    %1381 = vmatprep.subr.mxu0 0.0
    %1382 = vmatpush1.msra.mxu0 0.0
    %1383 = vmatprep.subr.mxu0 0.0
    %1384 = vmatpush1.msra.mxu0 0.0
    %1385 = vmatprep.subr.mxu0 0.0
    %1386 = vmatpush1.msra.mxu0 0.0
    %1387 = vmatprep.subr.mxu0 0.0
    %1388 = vmatpush1.msra.mxu0 0.0
    %1389 = vmatprep.subr.mxu0 0.0
    %1390 = vmatpush1.msra.mxu0 0.0
    %1391 = vmatprep.subr.mxu0 0.0
    %1392 = vmatpush1.msra.mxu0 0.0
    %1393 = vmatprep.subr.mxu0 0.0
    %1394 = vmatpush1.msra.mxu0 0.0
    %1395 = vmatprep.mubr.f32.mxu0 0.0
    %1396 = vmatmul.mubr.f32.gmra.mrb[0].mxu0 %v1326
    %v1397 = vpop.f32.mrb[0].mxu0
    %v1398 = vadd.f32 0.0, %v1397
    %v1399 = vpop.f32.mrb[0].mxu0
    %1400 = vmatprep.mubr.f32.mxu0 0.0
    %1401 = vmatmul.mubr.f32.gmra.mrb[0].mxu0 %v1329
    %v1402 = vpop.f32.mrb[0].mxu0
    %v1403 = vadd.f32 0.0, %v1402
    %v1404 = vpop.f32.mrb[0].mxu0
    %1405 = vdwg.mxu0
    %v1407 = vsel %vm136, %v1320, 0
    %v1410 = vsel %vm136, %v1321, 0
    %1412 = vmatprep.subr.mxu0 0.0
    %1413 = vmatpush1.msra.mxu0 %v1311
    %1414 = vmatprep.subr.mxu0 0.0
    %1415 = vmatpush1.msra.mxu0 %v1312
    %1416 = vmatprep.subr.mxu0 0.0
    %1417 = vmatpush1.msra.mxu0 0.0
    %1418 = vmatprep.subr.mxu0 0.0
    %1419 = vmatpush1.msra.mxu0 0.0
    %1420 = vmatprep.subr.mxu0 0.0
    %1421 = vmatpush1.msra.mxu0 0.0
    %1422 = vmatprep.subr.mxu0 0.0
    %1423 = vmatpush1.msra.mxu0 0.0
    %1424 = vmatprep.subr.mxu0 0.0
    %1425 = vmatpush1.msra.mxu0 0.0
    %1426 = vmatprep.subr.mxu0 0.0
    %1427 = vmatpush1.msra.mxu0 0.0
    %1428 = vmatprep.subr.mxu0 0.0
    %1429 = vmatpush1.msra.mxu0 0.0
    %1430 = vmatprep.subr.mxu0 0.0
    %1431 = vmatpush1.msra.mxu0 0.0
    %1432 = vmatprep.subr.mxu0 0.0
    %1433 = vmatpush1.msra.mxu0 0.0
    %1434 = vmatprep.subr.mxu0 0.0
    %1435 = vmatpush1.msra.mxu0 0.0
    %1436 = vmatprep.subr.mxu0 0.0
    %1437 = vmatpush1.msra.mxu0 0.0
    %1438 = vmatprep.subr.mxu0 0.0
    %1439 = vmatpush1.msra.mxu0 0.0
    %1440 = vmatprep.subr.mxu0 0.0
    %1441 = vmatpush1.msra.mxu0 0.0
    %1442 = vmatprep.subr.mxu0 0.0
    %1443 = vmatpush1.msra.mxu0 0.0
    %1444 = vmatprep.subr.mxu0 0.0
    %1445 = vmatpush1.msra.mxu0 0.0
    %1446 = vmatprep.subr.mxu0 0.0
    %1447 = vmatpush1.msra.mxu0 0.0
    %1448 = vmatprep.subr.mxu0 0.0
    %1449 = vmatpush1.msra.mxu0 0.0
    %1450 = vmatprep.subr.mxu0 0.0
    %1451 = vmatpush1.msra.mxu0 0.0
    %1452 = vmatprep.subr.mxu0 0.0
    %1453 = vmatpush1.msra.mxu0 0.0
    %1454 = vmatprep.subr.mxu0 0.0
    %1455 = vmatpush1.msra.mxu0 0.0
    %1456 = vmatprep.subr.mxu0 0.0
    %1457 = vmatpush1.msra.mxu0 0.0
    %1458 = vmatprep.subr.mxu0 0.0
    %1459 = vmatpush1.msra.mxu0 0.0
    %1460 = vmatprep.subr.mxu0 0.0
    %1461 = vmatpush1.msra.mxu0 0.0
    %1462 = vmatprep.subr.mxu0 0.0
    %1463 = vmatpush1.msra.mxu0 0.0
    %1464 = vmatprep.subr.mxu0 0.0
    %1465 = vmatpush1.msra.mxu0 0.0
    %1466 = vmatprep.subr.mxu0 0.0
    %1467 = vmatpush1.msra.mxu0 0.0
    %1468 = vmatprep.subr.mxu0 0.0
    %1469 = vmatpush1.msra.mxu0 0.0
    %1470 = vmatprep.subr.mxu0 0.0
    %1471 = vmatpush1.msra.mxu0 0.0
    %1472 = vmatprep.subr.mxu0 0.0
    %1473 = vmatpush1.msra.mxu0 0.0
    %1474 = vmatprep.subr.mxu0 0.0
    %1475 = vmatpush1.msra.mxu0 0.0
    %1476 = vmatprep.mubr.f32.mxu0 0.0
    %1477 = vmatmul.mubr.f32.gmra.mrb[0].mxu0 %v1407
    %v1478 = vpop.f32.mrb[0].mxu0
    %v1479 = vadd.f32 %v1398, %v1478
    %v1480 = vpop.f32.mrb[0].mxu0
    %1481 = vmatprep.mubr.f32.mxu0 0.0
    %1482 = vmatmul.mubr.f32.gmra.mrb[0].mxu0 %v1410
    %v1483 = vpop.f32.mrb[0].mxu0
    %v1484 = vadd.f32 %v1403, %v1483
    %v1485 = vpop.f32.mrb[0].mxu0
    %1486 = vdwg.mxu0
    %s1487 = scalar_lea.vmem %s6, 128
    %v1488 = vld [vmem:[%s1487] sm:$0xff]
    %v1489 = vld [vmem:[%s1487 + $0x8] sm:$0xff]
    %v1491 = vsel %vm136, %v1488, 0
    %v1494 = vsel %vm136, %v1489, 0
    %1496 = vmatprep.subr.mxu0 0.0
    %1497 = vmatpush1.msra.mxu0 %v1317
    %1498 = vmatprep.subr.mxu0 0.0
    %1499 = vmatpush1.msra.mxu0 %v1318
    %1500 = vmatprep.subr.mxu0 0.0
    %1501 = vmatpush1.msra.mxu0 0.0
    %1502 = vmatprep.subr.mxu0 0.0
    %1503 = vmatpush1.msra.mxu0 0.0
    %1504 = vmatprep.subr.mxu0 0.0
    %1505 = vmatpush1.msra.mxu0 0.0
    %1506 = vmatprep.subr.mxu0 0.0
    %1507 = vmatpush1.msra.mxu0 0.0
    %1508 = vmatprep.subr.mxu0 0.0
    %1509 = vmatpush1.msra.mxu0 0.0
    %1510 = vmatprep.subr.mxu0 0.0
    %1511 = vmatpush1.msra.mxu0 0.0
    %1512 = vmatprep.subr.mxu0 0.0
    %1513 = vmatpush1.msra.mxu0 0.0
    %1514 = vmatprep.subr.mxu0 0.0
    %1515 = vmatpush1.msra.mxu0 0.0
    %1516 = vmatprep.subr.mxu0 0.0
    %1517 = vmatpush1.msra.mxu0 0.0
    %1518 = vmatprep.subr.mxu0 0.0
    %1519 = vmatpush1.msra.mxu0 0.0
    %1520 = vmatprep.subr.mxu0 0.0
    %1521 = vmatpush1.msra.mxu0 0.0
    %1522 = vmatprep.subr.mxu0 0.0
    %1523 = vmatpush1.msra.mxu0 0.0
    %1524 = vmatprep.subr.mxu0 0.0
    %1525 = vmatpush1.msra.mxu0 0.0
    %1526 = vmatprep.subr.mxu0 0.0
    %1527 = vmatpush1.msra.mxu0 0.0
    %1528 = vmatprep.subr.mxu0 0.0
    %1529 = vmatpush1.msra.mxu0 0.0
    %1530 = vmatprep.subr.mxu0 0.0
    %1531 = vmatpush1.msra.mxu0 0.0
    %1532 = vmatprep.subr.mxu0 0.0
    %1533 = vmatpush1.msra.mxu0 0.0
    %1534 = vmatprep.subr.mxu0 0.0
    %1535 = vmatpush1.msra.mxu0 0.0
    %1536 = vmatprep.subr.mxu0 0.0
    %1537 = vmatpush1.msra.mxu0 0.0
    %1538 = vmatprep.subr.mxu0 0.0
    %1539 = vmatpush1.msra.mxu0 0.0
    %1540 = vmatprep.subr.mxu0 0.0
    %1541 = vmatpush1.msra.mxu0 0.0
    %1542 = vmatprep.subr.mxu0 0.0
    %1543 = vmatpush1.msra.mxu0 0.0
    %1544 = vmatprep.subr.mxu0 0.0
    %1545 = vmatpush1.msra.mxu0 0.0
    %1546 = vmatprep.subr.mxu0 0.0
    %1547 = vmatpush1.msra.mxu0 0.0
    %1548 = vmatprep.subr.mxu0 0.0
    %1549 = vmatpush1.msra.mxu0 0.0
    %1550 = vmatprep.subr.mxu0 0.0
    %1551 = vmatpush1.msra.mxu0 0.0
    %1552 = vmatprep.subr.mxu0 0.0
    %1553 = vmatpush1.msra.mxu0 0.0
    %1554 = vmatprep.subr.mxu0 0.0
    %1555 = vmatpush1.msra.mxu0 0.0
    %1556 = vmatprep.subr.mxu0 0.0
    %1557 = vmatpush1.msra.mxu0 0.0
    %1558 = vmatprep.subr.mxu0 0.0
    %1559 = vmatpush1.msra.mxu0 0.0
    %1560 = vmatprep.mubr.f32.mxu0 0.0
    %1561 = vmatmul.mubr.f32.gmra.mrb[0].mxu0 %v1491
    %v1562 = vpop.f32.mrb[0].mxu0
    %v1563 = vadd.f32 0.0, %v1562
    %v1564 = vpop.f32.mrb[0].mxu0
    %1565 = vmatprep.mubr.f32.mxu0 0.0
    %1566 = vmatmul.mubr.f32.gmra.mrb[0].mxu0 %v1494
    %v1567 = vpop.f32.mrb[0].mxu0
    %v1568 = vadd.f32 0.0, %v1567
    %v1569 = vpop.f32.mrb[0].mxu0
    %1570 = vdwg.mxu0
    %v1571 = vadd.f32 %v1479, %v1563
    %v1572 = vadd.f32 %v1484, %v1568
    %s1573 = scalar_lea.vmem %s7, 32
    %v1574 = vld [vmem:[%s1573] sm:$0xff]
    %v1575 = vld [vmem:[%s1573 + $0x8] sm:$0xff]
    %1577 = vset.pattern.permute.xlu0 0
    %1578 = vperm.xlu0 %1577, %v1574
    %v1579 = vpop.permute.xlu0 %1578
    %1582 = vset.pattern.permute.xlu0 0
    %1583 = vperm.xlu0 %1582, %v1575
    %v1584 = vpop.permute.xlu0 %1583
    %v1586 = vadd.f32 %v1571, %v1579
    %v1587 = vadd.f32 %v1572, %v1584
    %v1588 = vxor.u32 %v1586, 2147483648
    %v1589 = vxor.u32 %v1587, 2147483648
    %v1590 = vmul.f32 %v1588, 1.442695
    %v1591 = vpow.pop %v1590
    %v1592 = vmul.f32 %v1589, 1.442695
    %v1593 = vpow.pop %v1592
    %v1594 = vadd.f32 %v1591, 1.0
    %v1595 = vadd.f32 %v1593, 1.0
    %v1596 = vrcp.pop %v1594
    %v1597 = vmul.f32 1.0, %v1596
    %v1598 = vrcp.pop %v1595
    %v1599 = vmul.f32 1.0, %v1598
    %v1600 = vmul.f32 %v1586, %v1597
    %v1601 = vmul.f32 %v1587, %v1599
    %1602 = vrot.lane.b32.xlu0 %v1600, 1
    %v1603 = vpop.permute.xlu0 %1602
    %1604 = vrot.lane.b32.xlu0 %v1601, 1
    %v1605 = vpop.permute.xlu0 %1604
    %v1606 = vsel %vm720, 0.0, %v1603
    %v1607 = vsel %vm720, 0.0, %v1605
    %1608 = vrot.lane.b32.xlu0 %v1600, 127
    %v1609 = vpop.permute.xlu0 %1608
    %1610 = vrot.lane.b32.xlu0 %v1601, 127
    %v1611 = vpop.permute.xlu0 %1610
    %v1612 = vsel %vm728, 0.0, %v1609
    %v1613 = vsel %vm728, 0.0, %v1611
    %s1614 = scalar_lea.vmem %s6, 144
    %v1615 = vld [vmem:[%s1614] sm:$0xff]
    %v1616 = vld [vmem:[%s1614 + $0x8] sm:$0xff]
    %s1617 = scalar_lea.vmem %s6, 160
    %v1618 = vld [vmem:[%s1617] sm:$0xff]
    %v1619 = vld [vmem:[%s1617 + $0x8] sm:$0xff]
    %v1621 = vsel %vm136, %v1618, 0
    %v1624 = vsel %vm136, %v1619, 0
    %1626 = vmatprep.subr.mxu0 0.0
    %1627 = vmatpush1.msra.mxu0 %v1600
    %1628 = vmatprep.subr.mxu0 0.0
    %1629 = vmatpush1.msra.mxu0 %v1601
    %1630 = vmatprep.subr.mxu0 0.0
    %1631 = vmatpush1.msra.mxu0 0.0
    %1632 = vmatprep.subr.mxu0 0.0
    %1633 = vmatpush1.msra.mxu0 0.0
    %1634 = vmatprep.subr.mxu0 0.0
    %1635 = vmatpush1.msra.mxu0 0.0
    %1636 = vmatprep.subr.mxu0 0.0
    %1637 = vmatpush1.msra.mxu0 0.0
    %1638 = vmatprep.subr.mxu0 0.0
    %1639 = vmatpush1.msra.mxu0 0.0
    %1640 = vmatprep.subr.mxu0 0.0
    %1641 = vmatpush1.msra.mxu0 0.0
    %1642 = vmatprep.subr.mxu0 0.0
    %1643 = vmatpush1.msra.mxu0 0.0
    %1644 = vmatprep.subr.mxu0 0.0
    %1645 = vmatpush1.msra.mxu0 0.0
    %1646 = vmatprep.subr.mxu0 0.0
    %1647 = vmatpush1.msra.mxu0 0.0
    %1648 = vmatprep.subr.mxu0 0.0
    %1649 = vmatpush1.msra.mxu0 0.0
    %1650 = vmatprep.subr.mxu0 0.0
    %1651 = vmatpush1.msra.mxu0 0.0
    %1652 = vmatprep.subr.mxu0 0.0
    %1653 = vmatpush1.msra.mxu0 0.0
    %1654 = vmatprep.subr.mxu0 0.0
    %1655 = vmatpush1.msra.mxu0 0.0
    %1656 = vmatprep.subr.mxu0 0.0
    %1657 = vmatpush1.msra.mxu0 0.0
    %1658 = vmatprep.subr.mxu0 0.0
    %1659 = vmatpush1.msra.mxu0 0.0
    %1660 = vmatprep.subr.mxu0 0.0
    %1661 = vmatpush1.msra.mxu0 0.0
    %1662 = vmatprep.subr.mxu0 0.0
    %1663 = vmatpush1.msra.mxu0 0.0
    %1664 = vmatprep.subr.mxu0 0.0
    %1665 = vmatpush1.msra.mxu0 0.0
    %1666 = vmatprep.subr.mxu0 0.0
    %1667 = vmatpush1.msra.mxu0 0.0
    %1668 = vmatprep.subr.mxu0 0.0
    %1669 = vmatpush1.msra.mxu0 0.0
    %1670 = vmatprep.subr.mxu0 0.0
    %1671 = vmatpush1.msra.mxu0 0.0
    %1672 = vmatprep.subr.mxu0 0.0
    %1673 = vmatpush1.msra.mxu0 0.0
    %1674 = vmatprep.subr.mxu0 0.0
    %1675 = vmatpush1.msra.mxu0 0.0
    %1676 = vmatprep.subr.mxu0 0.0
    %1677 = vmatpush1.msra.mxu0 0.0
    %1678 = vmatprep.subr.mxu0 0.0
    %1679 = vmatpush1.msra.mxu0 0.0
    %1680 = vmatprep.subr.mxu0 0.0
    %1681 = vmatpush1.msra.mxu0 0.0
    %1682 = vmatprep.subr.mxu0 0.0
    %1683 = vmatpush1.msra.mxu0 0.0
    %1684 = vmatprep.subr.mxu0 0.0
    %1685 = vmatpush1.msra.mxu0 0.0
    %1686 = vmatprep.subr.mxu0 0.0
    %1687 = vmatpush1.msra.mxu0 0.0
    %1688 = vmatprep.subr.mxu0 0.0
    %1689 = vmatpush1.msra.mxu0 0.0
    %1690 = vmatprep.mubr.f32.mxu0 0.0
    %1691 = vmatmul.mubr.f32.gmra.mrb[0].mxu0 %v1621
    %v1692 = vpop.f32.mrb[0].mxu0
    %v1693 = vadd.f32 0.0, %v1692
    %v1694 = vpop.f32.mrb[0].mxu0
    %1695 = vmatprep.mubr.f32.mxu0 0.0
    %1696 = vmatmul.mubr.f32.gmra.mrb[0].mxu0 %v1624
    %v1697 = vpop.f32.mrb[0].mxu0
    %v1698 = vpop.f32.mrb[0].mxu0
    %1699 = vdwg.mxu0
    %v1701 = vsel %vm136, %v1615, 0
    %v1704 = vsel %vm136, %v1616, 0
    %1706 = vmatprep.subr.mxu0 0.0
    %1707 = vmatpush1.msra.mxu0 %v1606
    %1708 = vmatprep.subr.mxu0 0.0
    %1709 = vmatpush1.msra.mxu0 %v1607
    %1710 = vmatprep.subr.mxu0 0.0
    %1711 = vmatpush1.msra.mxu0 0.0
    %1712 = vmatprep.subr.mxu0 0.0
    %1713 = vmatpush1.msra.mxu0 0.0
    %1714 = vmatprep.subr.mxu0 0.0
    %1715 = vmatpush1.msra.mxu0 0.0
    %1716 = vmatprep.subr.mxu0 0.0
    %1717 = vmatpush1.msra.mxu0 0.0
    %1718 = vmatprep.subr.mxu0 0.0
    %1719 = vmatpush1.msra.mxu0 0.0
    %1720 = vmatprep.subr.mxu0 0.0
    %1721 = vmatpush1.msra.mxu0 0.0
    %1722 = vmatprep.subr.mxu0 0.0
    %1723 = vmatpush1.msra.mxu0 0.0
    %1724 = vmatprep.subr.mxu0 0.0
    %1725 = vmatpush1.msra.mxu0 0.0
    %1726 = vmatprep.subr.mxu0 0.0
    %1727 = vmatpush1.msra.mxu0 0.0
    %1728 = vmatprep.subr.mxu0 0.0
    %1729 = vmatpush1.msra.mxu0 0.0
    %1730 = vmatprep.subr.mxu0 0.0
    %1731 = vmatpush1.msra.mxu0 0.0
    %1732 = vmatprep.subr.mxu0 0.0
    %1733 = vmatpush1.msra.mxu0 0.0
    %1734 = vmatprep.subr.mxu0 0.0
    %1735 = vmatpush1.msra.mxu0 0.0
    %1736 = vmatprep.subr.mxu0 0.0
    %1737 = vmatpush1.msra.mxu0 0.0
    %1738 = vmatprep.subr.mxu0 0.0
    %1739 = vmatpush1.msra.mxu0 0.0
    %1740 = vmatprep.subr.mxu0 0.0
    %1741 = vmatpush1.msra.mxu0 0.0
    %1742 = vmatprep.subr.mxu0 0.0
    %1743 = vmatpush1.msra.mxu0 0.0
    %1744 = vmatprep.subr.mxu0 0.0
    %1745 = vmatpush1.msra.mxu0 0.0
    %1746 = vmatprep.subr.mxu0 0.0
    %1747 = vmatpush1.msra.mxu0 0.0
    %1748 = vmatprep.subr.mxu0 0.0
    %1749 = vmatpush1.msra.mxu0 0.0
    %1750 = vmatprep.subr.mxu0 0.0
    %1751 = vmatpush1.msra.mxu0 0.0
    %1752 = vmatprep.subr.mxu0 0.0
    %1753 = vmatpush1.msra.mxu0 0.0
    %1754 = vmatprep.subr.mxu0 0.0
    %1755 = vmatpush1.msra.mxu0 0.0
    %1756 = vmatprep.subr.mxu0 0.0
    %1757 = vmatpush1.msra.mxu0 0.0
    %1758 = vmatprep.subr.mxu0 0.0
    %1759 = vmatpush1.msra.mxu0 0.0
    %1760 = vmatprep.subr.mxu0 0.0
    %1761 = vmatpush1.msra.mxu0 0.0
    %1762 = vmatprep.subr.mxu0 0.0
    %1763 = vmatpush1.msra.mxu0 0.0
    %1764 = vmatprep.subr.mxu0 0.0
    %1765 = vmatpush1.msra.mxu0 0.0
    %1766 = vmatprep.subr.mxu0 0.0
    %1767 = vmatpush1.msra.mxu0 0.0
    %1768 = vmatprep.subr.mxu0 0.0
    %1769 = vmatpush1.msra.mxu0 0.0
    %1770 = vmatprep.mubr.f32.mxu0 0.0
    %1771 = vmatmul.mubr.f32.gmra.mrb[0].mxu0 %v1701
    %v1772 = vpop.f32.mrb[0].mxu0
    %v1773 = vadd.f32 %v1693, %v1772
    %v1774 = vpop.f32.mrb[0].mxu0
    %1775 = vmatprep.mubr.f32.mxu0 0.0
    %1776 = vmatmul.mubr.f32.gmra.mrb[0].mxu0 %v1704
    %v1777 = vpop.f32.mrb[0].mxu0
    %v1778 = vpop.f32.mrb[0].mxu0
    %1779 = vdwg.mxu0
    %s1780 = scalar_lea.vmem %s6, 176
    %v1781 = vld [vmem:[%s1780] sm:$0xff]
    %v1782 = vld [vmem:[%s1780 + $0x8] sm:$0xff]
    %v1784 = vsel %vm136, %v1781, 0
    %v1787 = vsel %vm136, %v1782, 0
    %1789 = vmatprep.subr.mxu0 0.0
    %1790 = vmatpush1.msra.mxu0 %v1612
    %1791 = vmatprep.subr.mxu0 0.0
    %1792 = vmatpush1.msra.mxu0 %v1613
    %1793 = vmatprep.subr.mxu0 0.0
    %1794 = vmatpush1.msra.mxu0 0.0
    %1795 = vmatprep.subr.mxu0 0.0
    %1796 = vmatpush1.msra.mxu0 0.0
    %1797 = vmatprep.subr.mxu0 0.0
    %1798 = vmatpush1.msra.mxu0 0.0
    %1799 = vmatprep.subr.mxu0 0.0
    %1800 = vmatpush1.msra.mxu0 0.0
    %1801 = vmatprep.subr.mxu0 0.0
    %1802 = vmatpush1.msra.mxu0 0.0
    %1803 = vmatprep.subr.mxu0 0.0
    %1804 = vmatpush1.msra.mxu0 0.0
    %1805 = vmatprep.subr.mxu0 0.0
    %1806 = vmatpush1.msra.mxu0 0.0
    %1807 = vmatprep.subr.mxu0 0.0
    %1808 = vmatpush1.msra.mxu0 0.0
    %1809 = vmatprep.subr.mxu0 0.0
    %1810 = vmatpush1.msra.mxu0 0.0
    %1811 = vmatprep.subr.mxu0 0.0
    %1812 = vmatpush1.msra.mxu0 0.0
    %1813 = vmatprep.subr.mxu0 0.0
    %1814 = vmatpush1.msra.mxu0 0.0
    %1815 = vmatprep.subr.mxu0 0.0
    %1816 = vmatpush1.msra.mxu0 0.0
    %1817 = vmatprep.subr.mxu0 0.0
    %1818 = vmatpush1.msra.mxu0 0.0
    %1819 = vmatprep.subr.mxu0 0.0
    %1820 = vmatpush1.msra.mxu0 0.0
    %1821 = vmatprep.subr.mxu0 0.0
    %1822 = vmatpush1.msra.mxu0 0.0
    %1823 = vmatprep.subr.mxu0 0.0
    %1824 = vmatpush1.msra.mxu0 0.0
    %1825 = vmatprep.subr.mxu0 0.0
    %1826 = vmatpush1.msra.mxu0 0.0
    %1827 = vmatprep.subr.mxu0 0.0
    %1828 = vmatpush1.msra.mxu0 0.0
    %1829 = vmatprep.subr.mxu0 0.0
    %1830 = vmatpush1.msra.mxu0 0.0
    %1831 = vmatprep.subr.mxu0 0.0
    %1832 = vmatpush1.msra.mxu0 0.0
    %1833 = vmatprep.subr.mxu0 0.0
    %1834 = vmatpush1.msra.mxu0 0.0
    %1835 = vmatprep.subr.mxu0 0.0
    %1836 = vmatpush1.msra.mxu0 0.0
    %1837 = vmatprep.subr.mxu0 0.0
    %1838 = vmatpush1.msra.mxu0 0.0
    %1839 = vmatprep.subr.mxu0 0.0
    %1840 = vmatpush1.msra.mxu0 0.0
    %1841 = vmatprep.subr.mxu0 0.0
    %1842 = vmatpush1.msra.mxu0 0.0
    %1843 = vmatprep.subr.mxu0 0.0
    %1844 = vmatpush1.msra.mxu0 0.0
    %1845 = vmatprep.subr.mxu0 0.0
    %1846 = vmatpush1.msra.mxu0 0.0
    %1847 = vmatprep.subr.mxu0 0.0
    %1848 = vmatpush1.msra.mxu0 0.0
    %1849 = vmatprep.subr.mxu0 0.0
    %1850 = vmatpush1.msra.mxu0 0.0
    %1851 = vmatprep.subr.mxu0 0.0
    %1852 = vmatpush1.msra.mxu0 0.0
    %1853 = vmatprep.mubr.f32.mxu0 0.0
    %1854 = vmatmul.mubr.f32.gmra.mrb[0].mxu0 %v1784
    %v1855 = vpop.f32.mrb[0].mxu0
    %v1856 = vadd.f32 0.0, %v1855
    %v1857 = vpop.f32.mrb[0].mxu0
    %1858 = vmatprep.mubr.f32.mxu0 0.0
    %1859 = vmatmul.mubr.f32.gmra.mrb[0].mxu0 %v1787
    %v1860 = vpop.f32.mrb[0].mxu0
    %v1861 = vpop.f32.mrb[0].mxu0
    %1862 = vdwg.mxu0
    %v1863 = vadd.f32 %v1773, %v1856
    %s1864 = scalar_lea.vmem %s7, 48
    %v1865 = vld [vmem:[%s1864] sm:$0xff]
    %1867 = vset.pattern.permute.xlu0 0
    %1868 = vperm.xlu0 %1867, %v1865
    %v1869 = vpop.permute.xlu0 %1868
    %v1871 = vadd.f32 %v1863, %v1869
    %v1872 = vsub.f32 %v697, %v1871
    %v1873 = vmul.f32 %v1872, %v1872
    %v1874 = vrot.slane %v1873, 4
    %v1875 = vadd.f32 %v1873, %v1874
    %v1876 = vrot.slane %v1875, 2
    %v1877 = vadd.f32 %v1875, %v1876
    %v1878 = vrot.slane %v1877, 1
    %v1879 = vadd.f32 %v1877, %v1878
    %1880 = vmatprep.subr.mxu0 0.0
    %1881 = vmatpush1.xpose.msra.mxu0 %v47
    %1882 = vmatprep.subr.mxu0 0.0
    %1883 = vmatpush1.xpose.msra.mxu0 0.0
    %1884 = vmatprep.subr.mxu0 0.0
    %1885 = vmatpush1.xpose.msra.mxu0 0.0
    %1886 = vmatprep.subr.mxu0 0.0
    %1887 = vmatpush1.xpose.msra.mxu0 0.0
    %1888 = vmatprep.subr.mxu0 0.0
    %1889 = vmatpush1.xpose.msra.mxu0 0.0
    %1890 = vmatprep.subr.mxu0 0.0
    %1891 = vmatpush1.xpose.msra.mxu0 0.0
    %1892 = vmatprep.subr.mxu0 0.0
    %1893 = vmatpush1.xpose.msra.mxu0 0.0
    %1894 = vmatprep.subr.mxu0 0.0
    %1895 = vmatpush1.xpose.msra.mxu0 0.0
    %1896 = vmatprep.subr.mxu0 0.0
    %1897 = vmatpush1.xpose.msra.mxu0 0.0
    %1898 = vmatprep.subr.mxu0 0.0
    %1899 = vmatpush1.xpose.msra.mxu0 0.0
    %1900 = vmatprep.subr.mxu0 0.0
    %1901 = vmatpush1.xpose.msra.mxu0 0.0
    %1902 = vmatprep.subr.mxu0 0.0
    %1903 = vmatpush1.xpose.msra.mxu0 0.0
    %1904 = vmatprep.subr.mxu0 0.0
    %1905 = vmatpush1.xpose.msra.mxu0 0.0
    %1906 = vmatprep.subr.mxu0 0.0
    %1907 = vmatpush1.xpose.msra.mxu0 0.0
    %1908 = vmatprep.subr.mxu0 0.0
    %1909 = vmatpush1.xpose.msra.mxu0 0.0
    %1910 = vmatprep.subr.mxu0 0.0
    %1911 = vmatpush1.xpose.msra.mxu0 0.0
    %1912 = vmatprep.subr.mxu0 0.0
    %1913 = vmatpush1.xpose.msra.mxu0 0.0
    %1914 = vmatprep.subr.mxu0 0.0
    %1915 = vmatpush1.xpose.msra.mxu0 0.0
    %1916 = vmatprep.subr.mxu0 0.0
    %1917 = vmatpush1.xpose.msra.mxu0 0.0
    %1918 = vmatprep.subr.mxu0 0.0
    %1919 = vmatpush1.xpose.msra.mxu0 0.0
    %1920 = vmatprep.subr.mxu0 0.0
    %1921 = vmatpush1.xpose.msra.mxu0 0.0
    %1922 = vmatprep.subr.mxu0 0.0
    %1923 = vmatpush1.xpose.msra.mxu0 0.0
    %1924 = vmatprep.subr.mxu0 0.0
    %1925 = vmatpush1.xpose.msra.mxu0 0.0
    %1926 = vmatprep.subr.mxu0 0.0
    %1927 = vmatpush1.xpose.msra.mxu0 0.0
    %1928 = vmatprep.subr.mxu0 0.0
    %1929 = vmatpush1.xpose.msra.mxu0 0.0
    %1930 = vmatprep.subr.mxu0 0.0
    %1931 = vmatpush1.xpose.msra.mxu0 0.0
    %1932 = vmatprep.subr.mxu0 0.0
    %1933 = vmatpush1.xpose.msra.mxu0 0.0
    %1934 = vmatprep.subr.mxu0 0.0
    %1935 = vmatpush1.xpose.msra.mxu0 0.0
    %1936 = vmatprep.subr.mxu0 0.0
    %1937 = vmatpush1.xpose.msra.mxu0 0.0
    %1938 = vmatprep.subr.mxu0 0.0
    %1939 = vmatpush1.xpose.msra.mxu0 0.0
    %1940 = vmatprep.subr.mxu0 0.0
    %1941 = vmatpush1.xpose.msra.mxu0 0.0
    %1942 = vmatprep.subr.mxu0 0.0
    %1943 = vmatpush1.xpose.msra.mxu0 0.0
    %1944 = vmatprep.mubr.f32.mxu0 0.0
    %1945 = vmatmul.mubr.f32.gmra.mrb[0].mxu0 %v1879
    %v1946 = vpop.f32.mrb[0].mxu0
    %v1947 = vadd.f32 0.0, %v1946
    %v1948 = vpop.f32.mrb[0].mxu0
    %1949 = vdwg.mxu0
    %v1950 = vmul.f32 %v1947, 0.0078125
    %vm1951 = vcmask 57344
    %1952 = vst.msk [vmem:[#allocation3] sm:$0x1] %vm1951, %v1950
    %v1953 = vsel %vm1951, %v1950, 0.0
    %1954 = vadd.xlane.f32.xlu0 %v1953
    %v1955 = vpop.xlane.xlu0 %1954
    %v1956 = vmul.f32 %v1955, 0.125
    %vm1957 = vcmask 0
    %1958 = vst.msk [vmem:[#allocation5] sm:$0x1] %vm1957, %v1956
    // Predicated region
    $region34: #{training_network_forward.3} parent=1 // pred_check
      _
    $region35: #{training_network_forward.3} parent=1 // pred_check_branch
      %1960 = sbr.rel (0) target = $region37
    $region36: #{training_network_forward.3} parent=1 // pred_region
      %s1962 = ssub.s32 16, 16
      %1963 = vsyncadd [#allocation4], %s1962
      %s1965 = sshll.u32 [#allocation3], 4
      %s1966 = int_to_ptr.vmem [resolvable:$true] %s1965
      %1968 = dma.vmem_to_hbm [thread:$0]  %s1966, 16, %s8, [#allocation4]
    $region37: #{training_network_forward.3} parent=1 // pred_fallthru
      _
    // Predicated region
    $region38: #{training_network_forward.3} parent=1 // pred_check
      _
    $region39: #{training_network_forward.3} parent=1 // pred_check_branch
      %1970 = sbr.rel (0) target = $region41
    $region40: #{training_network_forward.3} parent=1 // pred_region
      %s1972 = ssub.s32 16, 16
      %1973 = vsyncadd [#allocation6], %s1972
      %s1975 = sshll.u32 [#allocation5], 4
      %s1976 = int_to_ptr.vmem [resolvable:$true] %s1975
      %1978 = dma.vmem_to_hbm [thread:$0]  %s1976, 16, %s9, [#allocation6]
    $region41: #{training_network_forward.3} parent=1 // pred_fallthru
      _
    // Predicated region
    $region42: #{training_network_forward.3} parent=1 // pred_check
      _
    $region43: #{training_network_forward.3} parent=1 // pred_check_branch
      %1980 = sbr.rel (0) target = $region45
    $region44: #{training_network_forward.3} parent=1 // pred_region
      %1981 = dma.done [#allocation4], 16
    $region45: #{training_network_forward.3} parent=1 // pred_fallthru
      _
    // Predicated region
    $region46: #{training_network_forward.3} parent=1 // pred_check
      _
    $region47: #{training_network_forward.3} parent=1 // pred_check_branch
      %1983 = sbr.rel (0) target = $region49
    $region48: #{training_network_forward.3} parent=1 // pred_region
      %1984 = dma.done [#allocation6], 16
    $region49: #{training_network_forward.3} parent=1 // pred_fallthru
      _
    %1985 = vsyncpa [#allocation4], 1
    %1986 = vsyncpa [#allocation6], 1

</llo_original>
